<compile_context>
chip_gen: v5e
topology: v5e:2x2
jax: 0.10.0
libtpu: 0.0.40
codegen_flags: <defaults>
</compile_context>

<pallas_src>
import functools

import jax
import jax.numpy as jnp
from jax.experimental import pallas as pl
from jax.experimental.pallas import tpu as pltpu

TB_MAX = 2048                      # max batch-tile rows (per-tile VMEM ~30 MiB)
VMEM_LIMIT_BYTES = 48 * 1024 * 1024  # > v5e 16 MiB default, < v7x 64 MiB physical
LANE = 128
SUBLANE = 8


def _round_up(n, m):
    return ((n + m - 1) // m) * m


def default_epilogue_dtype():
    """bf16 epilogue on chips with a bf16 VALU (v6e/v7x), f32 otherwise."""
    try:
        kind = jax.devices()[0].device_kind.lower()
    except Exception:
        kind = ""
    if any(v in kind for v in ("v2", "v3", "v4", "v5")):
        return jnp.float32
    return jnp.bfloat16


# --------------------------------- kernel -----------------------------------

def _pressnet_kernel(x_ref, w_in_ref, b_in_ref, w_h_ref, b_h_ref,
                     w_out_ref, b_out_ref, o_ref, *, n_hidden, epi_dtype):
    """Whole PressNetSimple forward for one batch tile.

    Weights (bf16, pre-transposed to (in, out)) are VMEM-resident; every matmul
    runs on the MXU with bf16 operands and f32 accumulation.  The bias / ReLU /
    residual epilogue runs in `epi_dtype` (bf16 on v6e/v7x, f32 on v5e).
    Dropout = identity (eval mode).
    """
    x = x_ref[...].astype(jnp.bfloat16)                        # no-op if already bf16

    # input layer: h = relu(x @ W_in + b_in)
    h = jnp.dot(x, w_in_ref[...], preferred_element_type=jnp.float32)
    h = jnp.maximum(h + b_in_ref[...], 0.0).astype(epi_dtype)  # (TB, W)

    # hidden layers: h = relu(h @ W_i + b_i) + h   (static unrolled loop)
    b_h = b_h_ref[...].astype(epi_dtype)                       # hoisted bias cast
    for i in range(n_hidden):
        y = jnp.dot(h.astype(jnp.bfloat16), w_h_ref[i],
                    preferred_element_type=jnp.float32).astype(epi_dtype)
        y = jnp.maximum(y + b_h[i], 0.0)
        h = y + h

    # output layer (lane-padded to a multiple of 128): no activation
    out = jnp.dot(h.astype(jnp.bfloat16), w_out_ref[...],
                  preferred_element_type=jnp.float32)
    o_ref[...] = (out + b_out_ref[...]).astype(o_ref.dtype)


def _pressnet_pallas(x, wi, bi, wh, bh, wo, bo, *, tb, n_hidden, epi_dtype):
    """x: (B_pad, Din) f32/bf16 with B_pad % tb == 0.  Returns (B_pad, Dpad) f32."""
    B_pad, Din = x.shape
    Wd = wi.shape[1]
    Dpad = wo.shape[1]
    nb = B_pad // tb

    kernel = functools.partial(_pressnet_kernel, n_hidden=n_hidden,
                               epi_dtype=epi_dtype)

    flops = 2 * B_pad * (Din * Wd + n_hidden * Wd * Wd + Wd * Dpad)
    bytes_accessed = (x.size * x.dtype.itemsize
                      + B_pad * Dpad * 4
                      + (wi.size + wh.size + wo.size) * 2
                      + (bi.size + bh.size + bo.size) * 4)

    return pl.pallas_call(
        kernel,
        out_shape=jax.ShapeDtypeStruct((B_pad, Dpad), jnp.float32),
        grid=(nb,),
        in_specs=[
            pl.BlockSpec((tb, Din), lambda i: (i, 0)),             # x: batch-tiled
            pl.BlockSpec((Din, Wd), lambda i: (0, 0)),             # weights: constant
            pl.BlockSpec((1, Wd), lambda i: (0, 0)),               # block index ->
            pl.BlockSpec((n_hidden, Wd, Wd), lambda i: (0, 0, 0)),  # VMEM-resident
            pl.BlockSpec((n_hidden, 1, Wd), lambda i: (0, 0, 0)),
            pl.BlockSpec((Wd, Dpad), lambda i: (0, 0)),
            pl.BlockSpec((1, Dpad), lambda i: (0, 0)),
        ],
        out_specs=pl.BlockSpec((tb, Dpad), lambda i: (i, 0)),
        compiler_params=pltpu.CompilerParams(
            dimension_semantics=("parallel",),
            vmem_limit_bytes=VMEM_LIMIT_BYTES),
        cost_estimate=pl.CostEstimate(
            flops=flops, transcendentals=0, bytes_accessed=int(bytes_accessed)),
    )(x, wi, bi, wh, bh, wo, bo)


# --------------------------------- forward ----------------------------------

@functools.partial(jax.jit,
                   static_argnames=("flat_in", "out_size", "n_hidden", "epi_dtype"))
def press_net_forward(x, wi, bi, wh, bh, wo, bo, *,
                      flat_in, out_size, n_hidden, epi_dtype=jnp.float32):
    """Matches PressNetSimple.forward in eval mode (dropout = identity)."""
    B = x.shape[0]
    xf = x.reshape(B, flat_in)                                 # x.view(-1, flat)
    if xf.dtype not in (jnp.float32, jnp.bfloat16):
        xf = xf.astype(jnp.float32)

    # Batch-tile / grid selection: minimal padding; if the batch fits a single
    # tile, split it in two so the "parallel" axis can use both v7x TCs.
    nb = max(1, -(-B // TB_MAX))
    tb = _round_up(-(-B // nb), SUBLANE)
    if nb == 1 and tb >= 2 * SUBLANE:
        nb = 2
        tb = _round_up(-(-B // nb), SUBLANE)
    B_pad = nb * tb
    if B_pad != B:
        xf = jnp.pad(xf, ((0, B_pad - B), (0, 0)))

    out = _pressnet_pallas(xf, wi, bi, wh, bh, wo, bo,
                           tb=tb, n_hidden=n_hidden, epi_dtype=epi_dtype)
    return out[:B, :out_size]


# ----------------------------- parameter setup ------------------------------

def init_params(key, input_size, output_size, N=4, W=256):
    """Deterministic init mirroring nn.Linear ((out, in) weights, (out,) bias)."""
    flat_in = 1
    for d in input_size:
        flat_in *= int(d)

    def linear_init(k, fan_in, fan_out):
        kw, kb = jax.random.split(k)
        bound = 1.0 / (fan_in ** 0.5)
        w = jax.random.uniform(kw, (fan_out, fan_in), jnp.float32, -bound, bound)
        b = jax.random.uniform(kb, (fan_out,), jnp.float32, -bound, bound)
        return {"w": w, "b": b}

    keys = jax.random.split(key, N + 1)
    return {
        "input_layer": linear_init(keys[0], flat_in, W),
        "hidden_layers": [linear_init(keys[1 + i], W, W) for i in range(N - 1)],
        "output_layer": linear_init(keys[N], W, output_size),
        "flat_in": flat_in,
        "output_size": int(output_size),
        "n_hidden": N - 1,
    }


def prepare_params(params):
    """One-time layout prep (do NOT run per forward call):
       - transpose weights to (in, out) so the kernel computes x @ W,
       - cast MXU operands (weights) to bf16, keep biases f32,
       - stack hidden layers into (N-1, W, W) / (N-1, 1, W),
       - pad the output layer to a multiple of 128 lanes (lane-dense store).
    """
    wi = params["input_layer"]["w"].T.astype(jnp.bfloat16)            # (Din, W)
    bi = params["input_layer"]["b"][None, :].astype(jnp.float32)      # (1, W)
    wh = jnp.stack([p["w"].T for p in params["hidden_layers"]]).astype(jnp.bfloat16)
    bh = jnp.stack([p["b"][None, :] for p in params["hidden_layers"]]).astype(jnp.float32)
    wo_t = params["output_layer"]["w"].T.astype(jnp.float32)          # (W, Dout)
    bo = params["output_layer"]["b"][None, :].astype(jnp.float32)     # (1, Dout)
    dout = wo_t.shape[1]
    dpad = _round_up(dout, LANE)
    wo = jnp.pad(wo_t, ((0, 0), (0, dpad - dout))).astype(jnp.bfloat16)
    bo = jnp.pad(bo, ((0, 0), (0, dpad - dout)))
    return {"wi": wi, "bi": bi, "wh": wh, "bh": bh, "wo": wo, "bo": bo}


# --------------------------------- reference --------------------------------

def press_net_reference(params, x):
    """Pure-jnp f32 reference of the PyTorch module (eval mode)."""
    B = x.shape[0]
    h = x.reshape(B, params["flat_in"]).astype(jnp.float32)
    p = params["input_layer"]
    h = jnp.maximum(h @ p["w"].T + p["b"], 0.0)
    for p in params["hidden_layers"]:
        h = jnp.maximum(h @ p["w"].T + p["b"], 0.0) + h
    p = params["output_layer"]
    return h @ p["w"].T + p["b"]


if __name__ == "__main__":
    key = jax.random.PRNGKey(0)
    k_param, k_x, k_x2 = jax.random.split(key, 3)

    # Module config (small): input_size=(4, 16, 16) -> flattened 1024,
    # output_size=8, N=4 layers, hidden width W=256.
    input_size = (4, 16, 16)
    output_size = 8
    N, W = 4, 256

    params = init_params(k_param, input_size, output_size, N=N, W=W)
    prep = prepare_params(params)
    epi_dtype = default_epilogue_dtype()

    def run(xin):
        return press_net_forward(
            xin, prep["wi"], prep["bi"], prep["wh"], prep["bh"],
            prep["wo"], prep["bo"],
            flat_in=params["flat_in"], out_size=params["output_size"],
            n_hidden=params["n_hidden"], epi_dtype=epi_dtype)

    # Case 1: tiny batch (batch=2), matches the module's expected usage.
    x = jax.random.normal(k_x, (2,) + input_size, jnp.float32)
    out = jax.block_until_ready(run(x))
    ref = press_net_reference(params, x)
    assert out.shape == (2, output_size), out.shape
    # bf16 MXU operands / epilogue -> tolerance relaxed vs the pure-f32 reference.
    assert jnp.allclose(out, ref, atol=5e-2, rtol=5e-2), (
        f"mismatch vs reference: max abs diff = {float(jnp.max(jnp.abs(out - ref)))}")

    # Case 2: awkward batch size (37) exercising minimal padding + 2-tile grid.
    x2 = jax.random.normal(k_x2, (37,) + input_size, jnp.float32)
    out2 = jax.block_until_ready(run(x2))
    ref2 = press_net_reference(params, x2)
    assert out2.shape == (37, output_size), out2.shape
    assert jnp.allclose(out2, ref2, atol=5e-2, rtol=5e-2), (
        f"mismatch vs reference: max abs diff = {float(jnp.max(jnp.abs(out2 - ref2)))}")

    print("KERNEL_OK")
</pallas_src>

<mosaic_0001>
module attributes {stable_mosaic.version = 11 : i64} {
  func.func @_pressnet_kernel(%arg0: i32, %arg1: memref<8x1024xf32, #tpu.memory_space<vmem>>, %arg2: memref<1024x256xbf16, #tpu.memory_space<vmem>>, %arg3: memref<1x256xf32, #tpu.memory_space<vmem>>, %arg4: memref<3x256x256xbf16, #tpu.memory_space<vmem>>, %arg5: memref<3x1x256xf32, #tpu.memory_space<vmem>>, %arg6: memref<256x128xbf16, #tpu.memory_space<vmem>>, %arg7: memref<1x128xf32, #tpu.memory_space<vmem>>, %arg8: memref<8x128xf32, #tpu.memory_space<vmem>>) attributes {dimension_semantics = [#tpu.dimension_semantics<parallel>], iteration_bounds = array<i64: 1>, scalar_prefetch = 0 : i64, scratch_operands = 0 : i64, tpu.core_type = #tpu.core_type<tc>, window_params = [{transform_indices = @transform_0, window_bounds = array<i64: 8, 1024>}, {pipeline_mode = #tpu.pipeline_mode<synchronous>, transform_indices = @transform_1, window_bounds = array<i64: 1024, 256>}, {pipeline_mode = #tpu.pipeline_mode<synchronous>, transform_indices = @transform_2, window_bounds = array<i64: 1, 256>}, {pipeline_mode = #tpu.pipeline_mode<synchronous>, transform_indices = @transform_3, window_bounds = array<i64: 3, 256, 256>}, {pipeline_mode = #tpu.pipeline_mode<synchronous>, transform_indices = @transform_4, window_bounds = array<i64: 3, 1, 256>}, {pipeline_mode = #tpu.pipeline_mode<synchronous>, transform_indices = @transform_5, window_bounds = array<i64: 256, 128>}, {pipeline_mode = #tpu.pipeline_mode<synchronous>, transform_indices = @transform_6, window_bounds = array<i64: 1, 128>}, {transform_indices = @transform_7, window_bounds = array<i64: 8, 128>}]} {
    %c0 = arith.constant 0 : index
    %c0_0 = arith.constant 0 : index
    %0 = vector.load %arg1[%c0, %c0_0] : memref<8x1024xf32, #tpu.memory_space<vmem>>, vector<8x1024xf32>
    %1 = arith.truncf %0 : vector<8x1024xf32> to vector<8x1024xbf16>
    %c0_1 = arith.constant 0 : index
    %c0_2 = arith.constant 0 : index
    %2 = vector.load %arg2[%c0_1, %c0_2] : memref<1024x256xbf16, #tpu.memory_space<vmem>>, vector<1024x256xbf16>
    %cst = arith.constant dense<0.000000e+00> : vector<8x256xf32>
    %3 = tpu.matmul %1, %2, %cst {dimension_numbers = #tpu.dot_dimension_numbers<[1], [0], [0], [1], [0, 0, 1, 1], [], []>} : vector<8x1024xbf16>, vector<1024x256xbf16>, vector<8x256xf32> -> vector<8x256xf32>
    %c0_3 = arith.constant 0 : index
    %c0_4 = arith.constant 0 : index
    %4 = vector.load %arg3[%c0_3, %c0_4] : memref<1x256xf32, #tpu.memory_space<vmem>>, vector<1x256xf32>
    %5 = vector.broadcast %4 : vector<1x256xf32> to vector<8x256xf32>
    %6 = arith.addf %3, %5 : vector<8x256xf32>
    %cst_5 = arith.constant 0.000000e+00 : f32
    %7 = vector.broadcast %cst_5 : f32 to vector<8x256xf32>
    %8 = arith.maximumf %6, %7 : vector<8x256xf32>
    %9 = arith.truncf %8 : vector<8x256xf32> to vector<8x256xbf16>
    %c0_6 = arith.constant 0 : index
    %c0_7 = arith.constant 0 : index
    %c0_8 = arith.constant 0 : index
    %10 = vector.load %arg5[%c0_6, %c0_7, %c0_8] : memref<3x1x256xf32, #tpu.memory_space<vmem>>, vector<3x1x256xf32>
    %11 = arith.truncf %10 : vector<3x1x256xf32> to vector<3x1x256xbf16>
    %c0_9 = arith.constant 0 : index
    %c0_10 = arith.constant 0 : index
    %c0_11 = arith.constant 0 : index
    %12 = vector.load %arg4[%c0_9, %c0_10, %c0_11] : memref<3x256x256xbf16, #tpu.memory_space<vmem>>, vector<1x256x256xbf16>
    %13 = vector.shape_cast %12 : vector<1x256x256xbf16> to vector<256x256xbf16>
    %cst_12 = arith.constant dense<0.000000e+00> : vector<8x256xf32>
    %14 = tpu.matmul %9, %13, %cst_12 {dimension_numbers = #tpu.dot_dimension_numbers<[1], [0], [0], [1], [0, 0, 1, 1], [], []>} : vector<8x256xbf16>, vector<256x256xbf16>, vector<8x256xf32> -> vector<8x256xf32>
    %15 = arith.truncf %14 : vector<8x256xf32> to vector<8x256xbf16>
    %16 = vector.extract_strided_slice %11 {offsets = [0, 0, 0], sizes = [1, 1, 256], strides = [1, 1, 1]} : vector<3x1x256xbf16> to vector<1x1x256xbf16>
    %17 = vector.shape_cast %16 : vector<1x1x256xbf16> to vector<1x256xbf16>
    %18 = vector.broadcast %17 : vector<1x256xbf16> to vector<8x256xbf16>
    %19 = arith.addf %15, %18 : vector<8x256xbf16>
    %cst_13 = arith.constant 0.000000e+00 : bf16
    %20 = vector.broadcast %cst_13 : bf16 to vector<8x256xbf16>
    %21 = arith.maximumf %19, %20 : vector<8x256xbf16>
    %22 = arith.addf %21, %9 : vector<8x256xbf16>
    %c1 = arith.constant 1 : index
    %c0_14 = arith.constant 0 : index
    %c0_15 = arith.constant 0 : index
    %23 = vector.load %arg4[%c1, %c0_14, %c0_15] : memref<3x256x256xbf16, #tpu.memory_space<vmem>>, vector<1x256x256xbf16>
    %24 = vector.shape_cast %23 : vector<1x256x256xbf16> to vector<256x256xbf16>
    %cst_16 = arith.constant dense<0.000000e+00> : vector<8x256xf32>
    %25 = tpu.matmul %22, %24, %cst_16 {dimension_numbers = #tpu.dot_dimension_numbers<[1], [0], [0], [1], [0, 0, 1, 1], [], []>} : vector<8x256xbf16>, vector<256x256xbf16>, vector<8x256xf32> -> vector<8x256xf32>
    %26 = arith.truncf %25 : vector<8x256xf32> to vector<8x256xbf16>
    %27 = vector.extract_strided_slice %11 {offsets = [1, 0, 0], sizes = [1, 1, 256], strides = [1, 1, 1]} : vector<3x1x256xbf16> to vector<1x1x256xbf16>
    %28 = vector.shape_cast %27 : vector<1x1x256xbf16> to vector<1x256xbf16>
    %29 = vector.broadcast %28 : vector<1x256xbf16> to vector<8x256xbf16>
    %30 = arith.addf %26, %29 : vector<8x256xbf16>
    %cst_17 = arith.constant 0.000000e+00 : bf16
    %31 = vector.broadcast %cst_17 : bf16 to vector<8x256xbf16>
    %32 = arith.maximumf %30, %31 : vector<8x256xbf16>
    %33 = arith.addf %32, %22 : vector<8x256xbf16>
    %c2 = arith.constant 2 : index
    %c0_18 = arith.constant 0 : index
    %c0_19 = arith.constant 0 : index
    %34 = vector.load %arg4[%c2, %c0_18, %c0_19] : memref<3x256x256xbf16, #tpu.memory_space<vmem>>, vector<1x256x256xbf16>
    %35 = vector.shape_cast %34 : vector<1x256x256xbf16> to vector<256x256xbf16>
    %cst_20 = arith.constant dense<0.000000e+00> : vector<8x256xf32>
    %36 = tpu.matmul %33, %35, %cst_20 {dimension_numbers = #tpu.dot_dimension_numbers<[1], [0], [0], [1], [0, 0, 1, 1], [], []>} : vector<8x256xbf16>, vector<256x256xbf16>, vector<8x256xf32> -> vector<8x256xf32>
    %37 = arith.truncf %36 : vector<8x256xf32> to vector<8x256xbf16>
    %38 = vector.extract_strided_slice %11 {offsets = [2, 0, 0], sizes = [1, 1, 256], strides = [1, 1, 1]} : vector<3x1x256xbf16> to vector<1x1x256xbf16>
    %39 = vector.shape_cast %38 : vector<1x1x256xbf16> to vector<1x256xbf16>
    %40 = vector.broadcast %39 : vector<1x256xbf16> to vector<8x256xbf16>
    %41 = arith.addf %37, %40 : vector<8x256xbf16>
    %cst_21 = arith.constant 0.000000e+00 : bf16
    %42 = vector.broadcast %cst_21 : bf16 to vector<8x256xbf16>
    %43 = arith.maximumf %41, %42 : vector<8x256xbf16>
    %44 = arith.addf %43, %33 : vector<8x256xbf16>
    %c0_22 = arith.constant 0 : index
    %c0_23 = arith.constant 0 : index
    %45 = vector.load %arg6[%c0_22, %c0_23] : memref<256x128xbf16, #tpu.memory_space<vmem>>, vector<256x128xbf16>
    %cst_24 = arith.constant dense<0.000000e+00> : vector<8x128xf32>
    %46 = tpu.matmul %44, %45, %cst_24 {dimension_numbers = #tpu.dot_dimension_numbers<[1], [0], [0], [1], [0, 0, 1, 1], [], []>} : vector<8x256xbf16>, vector<256x128xbf16>, vector<8x128xf32> -> vector<8x128xf32>
    %c0_25 = arith.constant 0 : index
    %c0_26 = arith.constant 0 : index
    %47 = vector.load %arg7[%c0_25, %c0_26] : memref<1x128xf32, #tpu.memory_space<vmem>>, vector<1x128xf32>
    %48 = vector.broadcast %47 : vector<1x128xf32> to vector<8x128xf32>
    %49 = arith.addf %46, %48 : vector<8x128xf32>
    %c0_27 = arith.constant 0 : index
    %c0_28 = arith.constant 0 : index
    %50 = vector.load %arg8[%c0_27, %c0_28] : memref<8x128xf32, #tpu.memory_space<vmem>>, vector<8x128xf32>
    tpu.vector_store %arg8[%c0_27, %c0_28], %49 {strides = array<i32>} : memref<8x128xf32, #tpu.memory_space<vmem>>, vector<8x128xf32>,
    return
  }
  func.func @transform_0(%arg0: i32) -> (i32, i32) {
    %c0_i32 = arith.constant 0 : i32
    %c0_i32_0 = arith.constant 0 : i32
    return %arg0, %c0_i32 : i32, i32
  }
  func.func @transform_1(%arg0: i32) -> (i32, i32) {
    %c0_i32 = arith.constant 0 : i32
    %c0_i32_0 = arith.constant 0 : i32
    %c0_i32_1 = arith.constant 0 : i32
    return %c0_i32, %c0_i32_0 : i32, i32
  }
  func.func @transform_2(%arg0: i32) -> (i32, i32) {
    %c0_i32 = arith.constant 0 : i32
    %c0_i32_0 = arith.constant 0 : i32
    %c0_i32_1 = arith.constant 0 : i32
    return %c0_i32, %c0_i32_0 : i32, i32
  }
  func.func @transform_3(%arg0: i32) -> (i32, i32, i32) {
    %c0_i32 = arith.constant 0 : i32
    %c0_i32_0 = arith.constant 0 : i32
    %c0_i32_1 = arith.constant 0 : i32
    %c0_i32_2 = arith.constant 0 : i32
    return %c0_i32, %c0_i32_0, %c0_i32_1 : i32, i32, i32
  }
  func.func @transform_4(%arg0: i32) -> (i32, i32, i32) {
    %c0_i32 = arith.constant 0 : i32
    %c0_i32_0 = arith.constant 0 : i32
    %c0_i32_1 = arith.constant 0 : i32
    %c0_i32_2 = arith.constant 0 : i32
    return %c0_i32, %c0_i32_0, %c0_i32_1 : i32, i32, i32
  }
  func.func @transform_5(%arg0: i32) -> (i32, i32) {
    %c0_i32 = arith.constant 0 : i32
    %c0_i32_0 = arith.constant 0 : i32
    %c0_i32_1 = arith.constant 0 : i32
    return %c0_i32, %c0_i32_0 : i32, i32
  }
  func.func @transform_6(%arg0: i32) -> (i32, i32) {
    %c0_i32 = arith.constant 0 : i32
    %c0_i32_0 = arith.constant 0 : i32
    %c0_i32_1 = arith.constant 0 : i32
    return %c0_i32, %c0_i32_0 : i32, i32
  }
  func.func @transform_7(%arg0: i32) -> (i32, i32) {
    %c0_i32 = arith.constant 0 : i32
    %c0_i32_0 = arith.constant 0 : i32
    return %arg0, %c0_i32 : i32, i32
  }
}

</mosaic_0001>

<llo_original>
// kernel: press_net_forward.1
$region0: #{press_net_forward.1}
  #allocation0 [shape = 'u32[]', space=smem, size = 0x4, offset = 0x4, fixed_abs, tag = 'smem constant byte address 0x4 - core index']
  #allocation1 [shape = 'u32[72,128]{1,0:T(1,128)}', space=vmem, size = 0x9000, scoped, tag = 'internal scratch']
  %s0 = inlined_call_operand.vmem [shape: f32[8,1024], index: 0, kind: input, shape index: {}]
  %s1 = inlined_call_operand.hbm [shape: bf16[1024,256], index: 1, kind: input, shape index: {}]
  %s2 = inlined_call_operand.vmem [shape: f32[1,256], index: 2, kind: input, shape index: {}]
  %s3 = inlined_call_operand.hbm [shape: bf16[3,256,256], index: 3, kind: input, shape index: {}]
  %s4 = inlined_call_operand.vmem [shape: f32[3,1,256], index: 4, kind: input, shape index: {}]
  %s5 = inlined_call_operand.vmem [shape: bf16[256,128], index: 5, kind: input, shape index: {}]
  %s6 = inlined_call_operand.vmem [shape: f32[1,128], index: 6, kind: input, shape index: {}]
  %s7 = inlined_call_operand.vmem [shape: f32[8,128], index: 7, kind: output, shape index: {}]
  %s8 = sld [smem:[#allocation0]]
  $region46: #{press_net_forward.1} parent=0
    _
  %s10 = ssub.s32 1, %s8
  %s11 = scalar_select 0, %s10, %s8
  $region1: #{press_net_forward.1} parent=0
    #allocation2 [shape = 'u8[524288]{0}', space=vmem, size = 0x80000, scoped, tag = 'input window, operand 1, single buffered']
    #allocation3 [shape = 's32[1]{0}', space=sflag, size = 0x4, scoped, tag = 'scoped memory for press_net_forward.1']
    #allocation4 [shape = 'u8[393216]{0}', space=vmem, size = 0x60000, scoped, tag = 'input window, operand 3, single buffered']
    #allocation5 [shape = 's32[1]{0}', space=sflag, size = 0x4, scoped, tag = 'scoped memory for press_net_forward.1']
    %12 = vsyncpa [#allocation3], 0
    %13 = vsyncpa [#allocation5], 0
    // Predicated region
    $region2: #{press_net_forward.1} parent=1 // pred_check
      _
    $region3: #{press_net_forward.1} parent=1 // pred_check_branch
      %15 = sbr.rel (0) target = $region5
    $region4: #{press_net_forward.1} parent=1 // pred_region
      _
    $region5: #{press_net_forward.1} parent=1 // pred_fallthru
      _
    // Predicated region
    $region6: #{press_net_forward.1} parent=1 // pred_check
      _
    $region7: #{press_net_forward.1} parent=1 // pred_check_branch
      %17 = sbr.rel (0) target = $region9
    $region8: #{press_net_forward.1} parent=1 // pred_region
      %19 = vsyncadd [#allocation3], 0
      %s20 = sshll.u32 %s1, 4
      %s21 = int_to_ptr.hbm [resolvable:$true] %s20
      %s22 = sshll.u32 [#allocation2], 4
      %s23 = int_to_ptr.vmem [resolvable:$true] %s22
      %28 = dma.hbm_to_vmem [thread:$0]  %s21, 16384, %s23, [#allocation3], 128, 128, 8
    $region9: #{press_net_forward.1} parent=1 // pred_fallthru
      _
    // Predicated region
    $region10: #{press_net_forward.1} parent=1 // pred_check
      _
    $region11: #{press_net_forward.1} parent=1 // pred_check_branch
      %30 = sbr.rel (0) target = $region13
    $region12: #{press_net_forward.1} parent=1 // pred_region
      _
    $region13: #{press_net_forward.1} parent=1 // pred_fallthru
      _
    // Predicated region
    $region14: #{press_net_forward.1} parent=1 // pred_check
      _
    $region15: #{press_net_forward.1} parent=1 // pred_check_branch
      %32 = sbr.rel (0) target = $region17
    $region16: #{press_net_forward.1} parent=1 // pred_region
      %34 = vsyncadd [#allocation5], 0
      %s35 = sshll.u32 %s3, 4
      %s36 = int_to_ptr.hbm [resolvable:$true] %s35
      %s37 = sshll.u32 [#allocation4], 4
      %s38 = int_to_ptr.vmem [resolvable:$true] %s37
      %43 = dma.hbm_to_vmem [thread:$0]  %s36, 12288, %s38, [#allocation5], 128, 128, 8
    $region17: #{press_net_forward.1} parent=1 // pred_fallthru
      _
    // Predicated region
    $region18: #{press_net_forward.1} parent=1 // pred_check
      _
    $region19: #{press_net_forward.1} parent=1 // pred_check_branch
      %45 = sbr.rel (0) target = $region21
    $region20: #{press_net_forward.1} parent=1 // pred_region
      _
    $region21: #{press_net_forward.1} parent=1 // pred_fallthru
      _
    // Predicated region
    $region22: #{press_net_forward.1} parent=1 // pred_check
      _
    $region23: #{press_net_forward.1} parent=1 // pred_check_branch
      %47 = sbr.rel (0) target = $region25
    $region24: #{press_net_forward.1} parent=1 // pred_region
      _
    $region25: #{press_net_forward.1} parent=1 // pred_fallthru
      _
    // Predicated region
    $region26: #{press_net_forward.1} parent=1 // pred_check
      _
    $region27: #{press_net_forward.1} parent=1 // pred_check_branch
      %49 = sbr.rel (0) target = $region29
    $region28: #{press_net_forward.1} parent=1 // pred_region
      _
    $region29: #{press_net_forward.1} parent=1 // pred_fallthru
      _
    // Predicated region
    $region30: #{press_net_forward.1} parent=1 // pred_check
      _
    $region31: #{press_net_forward.1} parent=1 // pred_check_branch
      %51 = sbr.rel (0) target = $region33
    $region32: #{press_net_forward.1} parent=1 // pred_region
      %53 = dma.done [#allocation3], 16384
    $region33: #{press_net_forward.1} parent=1 // pred_fallthru
      _
    // Predicated region
    $region34: #{press_net_forward.1} parent=1 // pred_check
      _
    $region35: #{press_net_forward.1} parent=1 // pred_check_branch
      %55 = sbr.rel (0) target = $region37
    $region36: #{press_net_forward.1} parent=1 // pred_region
      %57 = dma.done [#allocation5], 12288
    $region37: #{press_net_forward.1} parent=1 // pred_fallthru
      _
    %v58 = vld [vmem:[%s0] sm:$0xff]
    %v59 = vld [vmem:[%s0 + $0x8] sm:$0xff]
    %v60 = vld [vmem:[%s0 + $0x10] sm:$0xff]
    %v61 = vld [vmem:[%s0 + $0x18] sm:$0xff]
    %v62 = vld [vmem:[%s0 + $0x20] sm:$0xff]
    %v63 = vld [vmem:[%s0 + $0x28] sm:$0xff]
    %v64 = vld [vmem:[%s0 + $0x30] sm:$0xff]
    %v65 = vld [vmem:[%s0 + $0x38] sm:$0xff]
    %v66 = vpack.c.bf16 %v58, %v58
    %v67 = vpack.c.bf16 %v59, %v59
    %v68 = vpack.c.bf16 %v60, %v60
    %v69 = vpack.c.bf16 %v61, %v61
    %v70 = vpack.c.bf16 %v62, %v62
    %v71 = vpack.c.bf16 %v63, %v63
    %v72 = vpack.c.bf16 %v64, %v64
    %v73 = vpack.c.bf16 %v65, %v65
    %v74 = vld [vmem:[#allocation2] sm:$0xff]
    %v75 = vld [vmem:[#allocation2 + $0x8] sm:$0xff]
    %v76 = vld [vmem:[#allocation2 + $0x10] sm:$0xff]
    %v77 = vld [vmem:[#allocation2 + $0x18] sm:$0xff]
    %v78 = vld [vmem:[#allocation2 + $0x20] sm:$0xff]
    %v79 = vld [vmem:[#allocation2 + $0x28] sm:$0xff]
    %v80 = vld [vmem:[#allocation2 + $0x30] sm:$0xff]
    %v81 = vld [vmem:[#allocation2 + $0x38] sm:$0xff]
    %v82 = vld [vmem:[#allocation2 + $0x40] sm:$0xff]
    %v83 = vld [vmem:[#allocation2 + $0x48] sm:$0xff]
    %v84 = vld [vmem:[#allocation2 + $0x50] sm:$0xff]
    %v85 = vld [vmem:[#allocation2 + $0x58] sm:$0xff]
    %v86 = vld [vmem:[#allocation2 + $0x60] sm:$0xff]
    %v87 = vld [vmem:[#allocation2 + $0x68] sm:$0xff]
    %v88 = vld [vmem:[#allocation2 + $0x70] sm:$0xff]
    %v89 = vld [vmem:[#allocation2 + $0x78] sm:$0xff]
    %v90 = vld [vmem:[#allocation2 + $0x80] sm:$0xff]
    %v91 = vld [vmem:[#allocation2 + $0x88] sm:$0xff]
    %v92 = vld [vmem:[#allocation2 + $0x90] sm:$0xff]
    %v93 = vld [vmem:[#allocation2 + $0x98] sm:$0xff]
    %v94 = vld [vmem:[#allocation2 + $0xa0] sm:$0xff]
    %v95 = vld [vmem:[#allocation2 + $0xa8] sm:$0xff]
    %v96 = vld [vmem:[#allocation2 + $0xb0] sm:$0xff]
    %v97 = vld [vmem:[#allocation2 + $0xb8] sm:$0xff]
    %v98 = vld [vmem:[#allocation2 + $0xc0] sm:$0xff]
    %v99 = vld [vmem:[#allocation2 + $0xc8] sm:$0xff]
    %v100 = vld [vmem:[#allocation2 + $0xd0] sm:$0xff]
    %v101 = vld [vmem:[#allocation2 + $0xd8] sm:$0xff]
    %v102 = vld [vmem:[#allocation2 + $0xe0] sm:$0xff]
    %v103 = vld [vmem:[#allocation2 + $0xe8] sm:$0xff]
    %v104 = vld [vmem:[#allocation2 + $0xf0] sm:$0xff]
    %v105 = vld [vmem:[#allocation2 + $0xf8] sm:$0xff]
    %v106 = vld [vmem:[#allocation2 + $0x100] sm:$0xff]
    %v107 = vld [vmem:[#allocation2 + $0x108] sm:$0xff]
    %v108 = vld [vmem:[#allocation2 + $0x110] sm:$0xff]
    %v109 = vld [vmem:[#allocation2 + $0x118] sm:$0xff]
    %v110 = vld [vmem:[#allocation2 + $0x120] sm:$0xff]
    %v111 = vld [vmem:[#allocation2 + $0x128] sm:$0xff]
    %v112 = vld [vmem:[#allocation2 + $0x130] sm:$0xff]
    %v113 = vld [vmem:[#allocation2 + $0x138] sm:$0xff]
    %v114 = vld [vmem:[#allocation2 + $0x140] sm:$0xff]
    %v115 = vld [vmem:[#allocation2 + $0x148] sm:$0xff]
    %v116 = vld [vmem:[#allocation2 + $0x150] sm:$0xff]
    %v117 = vld [vmem:[#allocation2 + $0x158] sm:$0xff]
    %v118 = vld [vmem:[#allocation2 + $0x160] sm:$0xff]
    %v119 = vld [vmem:[#allocation2 + $0x168] sm:$0xff]
    %v120 = vld [vmem:[#allocation2 + $0x170] sm:$0xff]
    %v121 = vld [vmem:[#allocation2 + $0x178] sm:$0xff]
    %v122 = vld [vmem:[#allocation2 + $0x180] sm:$0xff]
    %v123 = vld [vmem:[#allocation2 + $0x188] sm:$0xff]
    %v124 = vld [vmem:[#allocation2 + $0x190] sm:$0xff]
    %v125 = vld [vmem:[#allocation2 + $0x198] sm:$0xff]
    %v126 = vld [vmem:[#allocation2 + $0x1a0] sm:$0xff]
    %v127 = vld [vmem:[#allocation2 + $0x1a8] sm:$0xff]
    %v128 = vld [vmem:[#allocation2 + $0x1b0] sm:$0xff]
    %v129 = vld [vmem:[#allocation2 + $0x1b8] sm:$0xff]
    %v130 = vld [vmem:[#allocation2 + $0x1c0] sm:$0xff]
    %v131 = vld [vmem:[#allocation2 + $0x1c8] sm:$0xff]
    %v132 = vld [vmem:[#allocation2 + $0x1d0] sm:$0xff]
    %v133 = vld [vmem:[#allocation2 + $0x1d8] sm:$0xff]
    %v134 = vld [vmem:[#allocation2 + $0x1e0] sm:$0xff]
    %v135 = vld [vmem:[#allocation2 + $0x1e8] sm:$0xff]
    %v136 = vld [vmem:[#allocation2 + $0x1f0] sm:$0xff]
    %v137 = vld [vmem:[#allocation2 + $0x1f8] sm:$0xff]
    %v138 = vld [vmem:[#allocation2 + $0x200] sm:$0xff]
    %v139 = vld [vmem:[#allocation2 + $0x208] sm:$0xff]
    %v140 = vld [vmem:[#allocation2 + $0x210] sm:$0xff]
    %v141 = vld [vmem:[#allocation2 + $0x218] sm:$0xff]
    %v142 = vld [vmem:[#allocation2 + $0x220] sm:$0xff]
    %v143 = vld [vmem:[#allocation2 + $0x228] sm:$0xff]
    %v144 = vld [vmem:[#allocation2 + $0x230] sm:$0xff]
    %v145 = vld [vmem:[#allocation2 + $0x238] sm:$0xff]
    %v146 = vld [vmem:[#allocation2 + $0x240] sm:$0xff]
    %v147 = vld [vmem:[#allocation2 + $0x248] sm:$0xff]
    %v148 = vld [vmem:[#allocation2 + $0x250] sm:$0xff]
    %v149 = vld [vmem:[#allocation2 + $0x258] sm:$0xff]
    %v150 = vld [vmem:[#allocation2 + $0x260] sm:$0xff]
    %v151 = vld [vmem:[#allocation2 + $0x268] sm:$0xff]
    %v152 = vld [vmem:[#allocation2 + $0x270] sm:$0xff]
    %v153 = vld [vmem:[#allocation2 + $0x278] sm:$0xff]
    %v154 = vld [vmem:[#allocation2 + $0x280] sm:$0xff]
    %v155 = vld [vmem:[#allocation2 + $0x288] sm:$0xff]
    %v156 = vld [vmem:[#allocation2 + $0x290] sm:$0xff]
    %v157 = vld [vmem:[#allocation2 + $0x298] sm:$0xff]
    %v158 = vld [vmem:[#allocation2 + $0x2a0] sm:$0xff]
    %v159 = vld [vmem:[#allocation2 + $0x2a8] sm:$0xff]
    %v160 = vld [vmem:[#allocation2 + $0x2b0] sm:$0xff]
    %v161 = vld [vmem:[#allocation2 + $0x2b8] sm:$0xff]
    %v162 = vld [vmem:[#allocation2 + $0x2c0] sm:$0xff]
    %v163 = vld [vmem:[#allocation2 + $0x2c8] sm:$0xff]
    %v164 = vld [vmem:[#allocation2 + $0x2d0] sm:$0xff]
    %v165 = vld [vmem:[#allocation2 + $0x2d8] sm:$0xff]
    %v166 = vld [vmem:[#allocation2 + $0x2e0] sm:$0xff]
    %v167 = vld [vmem:[#allocation2 + $0x2e8] sm:$0xff]
    %v168 = vld [vmem:[#allocation2 + $0x2f0] sm:$0xff]
    %v169 = vld [vmem:[#allocation2 + $0x2f8] sm:$0xff]
    %v170 = vld [vmem:[#allocation2 + $0x300] sm:$0xff]
    %v171 = vld [vmem:[#allocation2 + $0x308] sm:$0xff]
    %v172 = vld [vmem:[#allocation2 + $0x310] sm:$0xff]
    %v173 = vld [vmem:[#allocation2 + $0x318] sm:$0xff]
    %v174 = vld [vmem:[#allocation2 + $0x320] sm:$0xff]
    %v175 = vld [vmem:[#allocation2 + $0x328] sm:$0xff]
    %v176 = vld [vmem:[#allocation2 + $0x330] sm:$0xff]
    %v177 = vld [vmem:[#allocation2 + $0x338] sm:$0xff]
    %v178 = vld [vmem:[#allocation2 + $0x340] sm:$0xff]
    %v179 = vld [vmem:[#allocation2 + $0x348] sm:$0xff]
    %v180 = vld [vmem:[#allocation2 + $0x350] sm:$0xff]
    %v181 = vld [vmem:[#allocation2 + $0x358] sm:$0xff]
    %v182 = vld [vmem:[#allocation2 + $0x360] sm:$0xff]
    %v183 = vld [vmem:[#allocation2 + $0x368] sm:$0xff]
    %v184 = vld [vmem:[#allocation2 + $0x370] sm:$0xff]
    %v185 = vld [vmem:[#allocation2 + $0x378] sm:$0xff]
    %v186 = vld [vmem:[#allocation2 + $0x380] sm:$0xff]
    %v187 = vld [vmem:[#allocation2 + $0x388] sm:$0xff]
    %v188 = vld [vmem:[#allocation2 + $0x390] sm:$0xff]
    %v189 = vld [vmem:[#allocation2 + $0x398] sm:$0xff]
    %v190 = vld [vmem:[#allocation2 + $0x3a0] sm:$0xff]
    %v191 = vld [vmem:[#allocation2 + $0x3a8] sm:$0xff]
    %v192 = vld [vmem:[#allocation2 + $0x3b0] sm:$0xff]
    %v193 = vld [vmem:[#allocation2 + $0x3b8] sm:$0xff]
    %v194 = vld [vmem:[#allocation2 + $0x3c0] sm:$0xff]
    %v195 = vld [vmem:[#allocation2 + $0x3c8] sm:$0xff]
    %v196 = vld [vmem:[#allocation2 + $0x3d0] sm:$0xff]
    %v197 = vld [vmem:[#allocation2 + $0x3d8] sm:$0xff]
    %v198 = vld [vmem:[#allocation2 + $0x3e0] sm:$0xff]
    %v199 = vld [vmem:[#allocation2 + $0x3e8] sm:$0xff]
    %v200 = vld [vmem:[#allocation2 + $0x3f0] sm:$0xff]
    %v201 = vld [vmem:[#allocation2 + $0x3f8] sm:$0xff]
    %v202 = vld [vmem:[%s2] sm:$0x3]
    %v204 = vperm.slane %v202, 0
    %v205 = vperm.slane %v202, 1
    %v336 = vunpack.c.l.b16 %v74
    %v337 = vunpack.c.h.b16 %v74
    %v338 = vunpack.c.l.b16 %v75
    %v339 = vunpack.c.h.b16 %v75
    %v340 = vunpack.c.l.b16 %v76
    %v341 = vunpack.c.h.b16 %v76
    %v342 = vunpack.c.l.b16 %v77
    %v343 = vunpack.c.h.b16 %v77
    %v344 = vunpack.c.l.b16 %v78
    %v345 = vunpack.c.h.b16 %v78
    %v346 = vunpack.c.l.b16 %v79
    %v347 = vunpack.c.h.b16 %v79
    %v348 = vunpack.c.l.b16 %v80
    %v349 = vunpack.c.h.b16 %v80
    %v350 = vunpack.c.l.b16 %v81
    %v351 = vunpack.c.h.b16 %v81
    %v352 = vunpack.c.l.b16 %v82
    %v353 = vunpack.c.h.b16 %v82
    %v354 = vunpack.c.l.b16 %v83
    %v355 = vunpack.c.h.b16 %v83
    %v356 = vunpack.c.l.b16 %v84
    %v357 = vunpack.c.h.b16 %v84
    %v358 = vunpack.c.l.b16 %v85
    %v359 = vunpack.c.h.b16 %v85
    %v360 = vunpack.c.l.b16 %v86
    %v361 = vunpack.c.h.b16 %v86
    %v362 = vunpack.c.l.b16 %v87
    %v363 = vunpack.c.h.b16 %v87
    %v364 = vunpack.c.l.b16 %v88
    %v365 = vunpack.c.h.b16 %v88
    %v366 = vunpack.c.l.b16 %v89
    %v367 = vunpack.c.h.b16 %v89
    %v368 = vunpack.c.l.b16 %v90
    %v369 = vunpack.c.h.b16 %v90
    %v370 = vunpack.c.l.b16 %v91
    %v371 = vunpack.c.h.b16 %v91
    %v372 = vunpack.c.l.b16 %v92
    %v373 = vunpack.c.h.b16 %v92
    %v374 = vunpack.c.l.b16 %v93
    %v375 = vunpack.c.h.b16 %v93
    %v376 = vunpack.c.l.b16 %v94
    %v377 = vunpack.c.h.b16 %v94
    %v378 = vunpack.c.l.b16 %v95
    %v379 = vunpack.c.h.b16 %v95
    %v380 = vunpack.c.l.b16 %v96
    %v381 = vunpack.c.h.b16 %v96
    %v382 = vunpack.c.l.b16 %v97
    %v383 = vunpack.c.h.b16 %v97
    %v384 = vunpack.c.l.b16 %v98
    %v385 = vunpack.c.h.b16 %v98
    %v386 = vunpack.c.l.b16 %v99
    %v387 = vunpack.c.h.b16 %v99
    %v388 = vunpack.c.l.b16 %v100
    %v389 = vunpack.c.h.b16 %v100
    %v390 = vunpack.c.l.b16 %v101
    %v391 = vunpack.c.h.b16 %v101
    %v392 = vunpack.c.l.b16 %v102
    %v393 = vunpack.c.h.b16 %v102
    %v394 = vunpack.c.l.b16 %v103
    %v395 = vunpack.c.h.b16 %v103
    %v396 = vunpack.c.l.b16 %v104
    %v397 = vunpack.c.h.b16 %v104
    %v398 = vunpack.c.l.b16 %v105
    %v399 = vunpack.c.h.b16 %v105
    %v400 = vunpack.c.l.b16 %v106
    %v401 = vunpack.c.h.b16 %v106
    %v402 = vunpack.c.l.b16 %v107
    %v403 = vunpack.c.h.b16 %v107
    %v404 = vunpack.c.l.b16 %v108
    %v405 = vunpack.c.h.b16 %v108
    %v406 = vunpack.c.l.b16 %v109
    %v407 = vunpack.c.h.b16 %v109
    %v408 = vunpack.c.l.b16 %v110
    %v409 = vunpack.c.h.b16 %v110
    %v410 = vunpack.c.l.b16 %v111
    %v411 = vunpack.c.h.b16 %v111
    %v412 = vunpack.c.l.b16 %v112
    %v413 = vunpack.c.h.b16 %v112
    %v414 = vunpack.c.l.b16 %v113
    %v415 = vunpack.c.h.b16 %v113
    %v416 = vunpack.c.l.b16 %v114
    %v417 = vunpack.c.h.b16 %v114
    %v418 = vunpack.c.l.b16 %v115
    %v419 = vunpack.c.h.b16 %v115
    %v420 = vunpack.c.l.b16 %v116
    %v421 = vunpack.c.h.b16 %v116
    %v422 = vunpack.c.l.b16 %v117
    %v423 = vunpack.c.h.b16 %v117
    %v424 = vunpack.c.l.b16 %v118
    %v425 = vunpack.c.h.b16 %v118
    %v426 = vunpack.c.l.b16 %v119
    %v427 = vunpack.c.h.b16 %v119
    %v428 = vunpack.c.l.b16 %v120
    %v429 = vunpack.c.h.b16 %v120
    %v430 = vunpack.c.l.b16 %v121
    %v431 = vunpack.c.h.b16 %v121
    %v432 = vunpack.c.l.b16 %v122
    %v433 = vunpack.c.h.b16 %v122
    %v434 = vunpack.c.l.b16 %v123
    %v435 = vunpack.c.h.b16 %v123
    %v436 = vunpack.c.l.b16 %v124
    %v437 = vunpack.c.h.b16 %v124
    %v438 = vunpack.c.l.b16 %v125
    %v439 = vunpack.c.h.b16 %v125
    %v440 = vunpack.c.l.b16 %v126
    %v441 = vunpack.c.h.b16 %v126
    %v442 = vunpack.c.l.b16 %v127
    %v443 = vunpack.c.h.b16 %v127
    %v444 = vunpack.c.l.b16 %v128
    %v445 = vunpack.c.h.b16 %v128
    %v446 = vunpack.c.l.b16 %v129
    %v447 = vunpack.c.h.b16 %v129
    %v448 = vunpack.c.l.b16 %v130
    %v449 = vunpack.c.h.b16 %v130
    %v450 = vunpack.c.l.b16 %v131
    %v451 = vunpack.c.h.b16 %v131
    %v452 = vunpack.c.l.b16 %v132
    %v453 = vunpack.c.h.b16 %v132
    %v454 = vunpack.c.l.b16 %v133
    %v455 = vunpack.c.h.b16 %v133
    %v456 = vunpack.c.l.b16 %v134
    %v457 = vunpack.c.h.b16 %v134
    %v458 = vunpack.c.l.b16 %v135
    %v459 = vunpack.c.h.b16 %v135
    %v460 = vunpack.c.l.b16 %v136
    %v461 = vunpack.c.h.b16 %v136
    %v462 = vunpack.c.l.b16 %v137
    %v463 = vunpack.c.h.b16 %v137
    %v464 = vunpack.c.l.b16 %v138
    %v465 = vunpack.c.h.b16 %v138
    %v466 = vunpack.c.l.b16 %v139
    %v467 = vunpack.c.h.b16 %v139
    %v468 = vunpack.c.l.b16 %v140
    %v469 = vunpack.c.h.b16 %v140
    %v470 = vunpack.c.l.b16 %v141
    %v471 = vunpack.c.h.b16 %v141
    %v472 = vunpack.c.l.b16 %v142
    %v473 = vunpack.c.h.b16 %v142
    %v474 = vunpack.c.l.b16 %v143
    %v475 = vunpack.c.h.b16 %v143
    %v476 = vunpack.c.l.b16 %v144
    %v477 = vunpack.c.h.b16 %v144
    %v478 = vunpack.c.l.b16 %v145
    %v479 = vunpack.c.h.b16 %v145
    %v480 = vunpack.c.l.b16 %v146
    %v481 = vunpack.c.h.b16 %v146
    %v482 = vunpack.c.l.b16 %v147
    %v483 = vunpack.c.h.b16 %v147
    %v484 = vunpack.c.l.b16 %v148
    %v485 = vunpack.c.h.b16 %v148
    %v486 = vunpack.c.l.b16 %v149
    %v487 = vunpack.c.h.b16 %v149
    %v488 = vunpack.c.l.b16 %v150
    %v489 = vunpack.c.h.b16 %v150
    %v490 = vunpack.c.l.b16 %v151
    %v491 = vunpack.c.h.b16 %v151
    %v492 = vunpack.c.l.b16 %v152
    %v493 = vunpack.c.h.b16 %v152
    %v494 = vunpack.c.l.b16 %v153
    %v495 = vunpack.c.h.b16 %v153
    %v496 = vunpack.c.l.b16 %v154
    %v497 = vunpack.c.h.b16 %v154
    %v498 = vunpack.c.l.b16 %v155
    %v499 = vunpack.c.h.b16 %v155
    %v500 = vunpack.c.l.b16 %v156
    %v501 = vunpack.c.h.b16 %v156
    %v502 = vunpack.c.l.b16 %v157
    %v503 = vunpack.c.h.b16 %v157
    %v504 = vunpack.c.l.b16 %v158
    %v505 = vunpack.c.h.b16 %v158
    %v506 = vunpack.c.l.b16 %v159
    %v507 = vunpack.c.h.b16 %v159
    %v508 = vunpack.c.l.b16 %v160
    %v509 = vunpack.c.h.b16 %v160
    %v510 = vunpack.c.l.b16 %v161
    %v511 = vunpack.c.h.b16 %v161
    %v512 = vunpack.c.l.b16 %v162
    %v513 = vunpack.c.h.b16 %v162
    %v514 = vunpack.c.l.b16 %v163
    %v515 = vunpack.c.h.b16 %v163
    %v516 = vunpack.c.l.b16 %v164
    %v517 = vunpack.c.h.b16 %v164
    %v518 = vunpack.c.l.b16 %v165
    %v519 = vunpack.c.h.b16 %v165
    %v520 = vunpack.c.l.b16 %v166
    %v521 = vunpack.c.h.b16 %v166
    %v522 = vunpack.c.l.b16 %v167
    %v523 = vunpack.c.h.b16 %v167
    %v524 = vunpack.c.l.b16 %v168
    %v525 = vunpack.c.h.b16 %v168
    %v526 = vunpack.c.l.b16 %v169
    %v527 = vunpack.c.h.b16 %v169
    %v528 = vunpack.c.l.b16 %v170
    %v529 = vunpack.c.h.b16 %v170
    %v530 = vunpack.c.l.b16 %v171
    %v531 = vunpack.c.h.b16 %v171
    %v532 = vunpack.c.l.b16 %v172
    %v533 = vunpack.c.h.b16 %v172
    %v534 = vunpack.c.l.b16 %v173
    %v535 = vunpack.c.h.b16 %v173
    %v536 = vunpack.c.l.b16 %v174
    %v537 = vunpack.c.h.b16 %v174
    %v538 = vunpack.c.l.b16 %v175
    %v539 = vunpack.c.h.b16 %v175
    %v540 = vunpack.c.l.b16 %v176
    %v541 = vunpack.c.h.b16 %v176
    %v542 = vunpack.c.l.b16 %v177
    %v543 = vunpack.c.h.b16 %v177
    %v544 = vunpack.c.l.b16 %v178
    %v545 = vunpack.c.h.b16 %v178
    %v546 = vunpack.c.l.b16 %v179
    %v547 = vunpack.c.h.b16 %v179
    %v548 = vunpack.c.l.b16 %v180
    %v549 = vunpack.c.h.b16 %v180
    %v550 = vunpack.c.l.b16 %v181
    %v551 = vunpack.c.h.b16 %v181
    %v552 = vunpack.c.l.b16 %v182
    %v553 = vunpack.c.h.b16 %v182
    %v554 = vunpack.c.l.b16 %v183
    %v555 = vunpack.c.h.b16 %v183
    %v556 = vunpack.c.l.b16 %v184
    %v557 = vunpack.c.h.b16 %v184
    %v558 = vunpack.c.l.b16 %v185
    %v559 = vunpack.c.h.b16 %v185
    %v560 = vunpack.c.l.b16 %v186
    %v561 = vunpack.c.h.b16 %v186
    %v562 = vunpack.c.l.b16 %v187
    %v563 = vunpack.c.h.b16 %v187
    %v564 = vunpack.c.l.b16 %v188
    %v565 = vunpack.c.h.b16 %v188
    %v566 = vunpack.c.l.b16 %v189
    %v567 = vunpack.c.h.b16 %v189
    %v568 = vunpack.c.l.b16 %v190
    %v569 = vunpack.c.h.b16 %v190
    %v570 = vunpack.c.l.b16 %v191
    %v571 = vunpack.c.h.b16 %v191
    %v572 = vunpack.c.l.b16 %v192
    %v573 = vunpack.c.h.b16 %v192
    %v574 = vunpack.c.l.b16 %v193
    %v575 = vunpack.c.h.b16 %v193
    %v576 = vunpack.c.l.b16 %v194
    %v577 = vunpack.c.h.b16 %v194
    %v578 = vunpack.c.l.b16 %v195
    %v579 = vunpack.c.h.b16 %v195
    %v580 = vunpack.c.l.b16 %v196
    %v581 = vunpack.c.h.b16 %v196
    %v582 = vunpack.c.l.b16 %v197
    %v583 = vunpack.c.h.b16 %v197
    %v584 = vunpack.c.l.b16 %v198
    %v585 = vunpack.c.h.b16 %v198
    %v586 = vunpack.c.l.b16 %v199
    %v587 = vunpack.c.h.b16 %v199
    %v588 = vunpack.c.l.b16 %v200
    %v589 = vunpack.c.h.b16 %v200
    %v590 = vunpack.c.l.b16 %v201
    %v591 = vunpack.c.h.b16 %v201
    %v592 = vpack.c.b16 %v338, %v336
    %v593 = vpack.c.b16 %v339, %v337
    %v594 = vpack.c.b16 %v342, %v340
    %v595 = vpack.c.b16 %v343, %v341
    %v596 = vpack.c.b16 %v346, %v344
    %v597 = vpack.c.b16 %v347, %v345
    %v598 = vpack.c.b16 %v350, %v348
    %v599 = vpack.c.b16 %v351, %v349
    %v600 = vpack.c.b16 %v354, %v352
    %v601 = vpack.c.b16 %v355, %v353
    %v602 = vpack.c.b16 %v358, %v356
    %v603 = vpack.c.b16 %v359, %v357
    %v604 = vpack.c.b16 %v362, %v360
    %v605 = vpack.c.b16 %v363, %v361
    %v606 = vpack.c.b16 %v366, %v364
    %v607 = vpack.c.b16 %v367, %v365
    %v608 = vpack.c.b16 %v370, %v368
    %v609 = vpack.c.b16 %v371, %v369
    %v610 = vpack.c.b16 %v374, %v372
    %v611 = vpack.c.b16 %v375, %v373
    %v612 = vpack.c.b16 %v378, %v376
    %v613 = vpack.c.b16 %v379, %v377
    %v614 = vpack.c.b16 %v382, %v380
    %v615 = vpack.c.b16 %v383, %v381
    %v616 = vpack.c.b16 %v386, %v384
    %v617 = vpack.c.b16 %v387, %v385
    %v618 = vpack.c.b16 %v390, %v388
    %v619 = vpack.c.b16 %v391, %v389
    %v620 = vpack.c.b16 %v394, %v392
    %v621 = vpack.c.b16 %v395, %v393
    %v622 = vpack.c.b16 %v398, %v396
    %v623 = vpack.c.b16 %v399, %v397
    %v624 = vpack.c.b16 %v402, %v400
    %v625 = vpack.c.b16 %v403, %v401
    %v626 = vpack.c.b16 %v406, %v404
    %v627 = vpack.c.b16 %v407, %v405
    %v628 = vpack.c.b16 %v410, %v408
    %v629 = vpack.c.b16 %v411, %v409
    %v630 = vpack.c.b16 %v414, %v412
    %v631 = vpack.c.b16 %v415, %v413
    %v632 = vpack.c.b16 %v418, %v416
    %v633 = vpack.c.b16 %v419, %v417
    %v634 = vpack.c.b16 %v422, %v420
    %v635 = vpack.c.b16 %v423, %v421
    %v636 = vpack.c.b16 %v426, %v424
    %v637 = vpack.c.b16 %v427, %v425
    %v638 = vpack.c.b16 %v430, %v428
    %v639 = vpack.c.b16 %v431, %v429
    %v640 = vpack.c.b16 %v434, %v432
    %v641 = vpack.c.b16 %v435, %v433
    %v642 = vpack.c.b16 %v438, %v436
    %v643 = vpack.c.b16 %v439, %v437
    %v644 = vpack.c.b16 %v442, %v440
    %v645 = vpack.c.b16 %v443, %v441
    %v646 = vpack.c.b16 %v446, %v444
    %v647 = vpack.c.b16 %v447, %v445
    %v648 = vpack.c.b16 %v450, %v448
    %v649 = vpack.c.b16 %v451, %v449
    %v650 = vpack.c.b16 %v454, %v452
    %v651 = vpack.c.b16 %v455, %v453
    %v652 = vpack.c.b16 %v458, %v456
    %v653 = vpack.c.b16 %v459, %v457
    %v654 = vpack.c.b16 %v462, %v460
    %v655 = vpack.c.b16 %v463, %v461
    %v656 = vpack.c.b16 %v466, %v464
    %v657 = vpack.c.b16 %v467, %v465
    %v658 = vpack.c.b16 %v470, %v468
    %v659 = vpack.c.b16 %v471, %v469
    %v660 = vpack.c.b16 %v474, %v472
    %v661 = vpack.c.b16 %v475, %v473
    %v662 = vpack.c.b16 %v478, %v476
    %v663 = vpack.c.b16 %v479, %v477
    %v664 = vpack.c.b16 %v482, %v480
    %v665 = vpack.c.b16 %v483, %v481
    %v666 = vpack.c.b16 %v486, %v484
    %v667 = vpack.c.b16 %v487, %v485
    %v668 = vpack.c.b16 %v490, %v488
    %v669 = vpack.c.b16 %v491, %v489
    %v670 = vpack.c.b16 %v494, %v492
    %v671 = vpack.c.b16 %v495, %v493
    %v672 = vpack.c.b16 %v498, %v496
    %v673 = vpack.c.b16 %v499, %v497
    %v674 = vpack.c.b16 %v502, %v500
    %v675 = vpack.c.b16 %v503, %v501
    %v676 = vpack.c.b16 %v506, %v504
    %v677 = vpack.c.b16 %v507, %v505
    %v678 = vpack.c.b16 %v510, %v508
    %v679 = vpack.c.b16 %v511, %v509
    %v680 = vpack.c.b16 %v514, %v512
    %v681 = vpack.c.b16 %v515, %v513
    %v682 = vpack.c.b16 %v518, %v516
    %v683 = vpack.c.b16 %v519, %v517
    %v684 = vpack.c.b16 %v522, %v520
    %v685 = vpack.c.b16 %v523, %v521
    %v686 = vpack.c.b16 %v526, %v524
    %v687 = vpack.c.b16 %v527, %v525
    %v688 = vpack.c.b16 %v530, %v528
    %v689 = vpack.c.b16 %v531, %v529
    %v690 = vpack.c.b16 %v534, %v532
    %v691 = vpack.c.b16 %v535, %v533
    %v692 = vpack.c.b16 %v538, %v536
    %v693 = vpack.c.b16 %v539, %v537
    %v694 = vpack.c.b16 %v542, %v540
    %v695 = vpack.c.b16 %v543, %v541
    %v696 = vpack.c.b16 %v546, %v544
    %v697 = vpack.c.b16 %v547, %v545
    %v698 = vpack.c.b16 %v550, %v548
    %v699 = vpack.c.b16 %v551, %v549
    %v700 = vpack.c.b16 %v554, %v552
    %v701 = vpack.c.b16 %v555, %v553
    %v702 = vpack.c.b16 %v558, %v556
    %v703 = vpack.c.b16 %v559, %v557
    %v704 = vpack.c.b16 %v562, %v560
    %v705 = vpack.c.b16 %v563, %v561
    %v706 = vpack.c.b16 %v566, %v564
    %v707 = vpack.c.b16 %v567, %v565
    %v708 = vpack.c.b16 %v570, %v568
    %v709 = vpack.c.b16 %v571, %v569
    %v710 = vpack.c.b16 %v574, %v572
    %v711 = vpack.c.b16 %v575, %v573
    %v712 = vpack.c.b16 %v578, %v576
    %v713 = vpack.c.b16 %v579, %v577
    %v714 = vpack.c.b16 %v582, %v580
    %v715 = vpack.c.b16 %v583, %v581
    %v716 = vpack.c.b16 %v586, %v584
    %v717 = vpack.c.b16 %v587, %v585
    %v718 = vpack.c.b16 %v590, %v588
    %v719 = vpack.c.b16 %v591, %v589
    %848 = vmatpush.bf16.msra.mxu0 %v606
    %849 = vmatpush.bf16.msra.mxu0 %v604
    %850 = vmatpush.bf16.msra.mxu0 %v602
    %851 = vmatpush.bf16.msra.mxu0 %v600
    %852 = vmatpush.bf16.msra.mxu0 %v598
    %853 = vmatpush.bf16.msra.mxu0 %v596
    %854 = vmatpush.bf16.msra.mxu0 %v594
    %855 = vmatpush.bf16.msra.mxu0 %v592
    %856 = vmatmul.bf16.gmra.mxu0 %v66
    %v857 = vpop.f32.mrf.mxu0
    %v858 = vadd.f32 %v204, %v857
    %v859 = vpop.f32.mrf.mxu0
    %860 = vdwg.mxu0
    %861 = vmatpush.bf16.msra.mxu0 %v622
    %862 = vmatpush.bf16.msra.mxu0 %v620
    %863 = vmatpush.bf16.msra.mxu0 %v618
    %864 = vmatpush.bf16.msra.mxu0 %v616
    %865 = vmatpush.bf16.msra.mxu0 %v614
    %866 = vmatpush.bf16.msra.mxu0 %v612
    %867 = vmatpush.bf16.msra.mxu0 %v610
    %868 = vmatpush.bf16.msra.mxu0 %v608
    %869 = vmatmul.bf16.gmra.mxu0 %v67
    %v870 = vpop.f32.mrf.mxu0
    %v871 = vadd.f32 %v858, %v870
    %v872 = vpop.f32.mrf.mxu0
    %873 = vdwg.mxu0
    %874 = vmatpush.bf16.msra.mxu0 %v638
    %875 = vmatpush.bf16.msra.mxu0 %v636
    %876 = vmatpush.bf16.msra.mxu0 %v634
    %877 = vmatpush.bf16.msra.mxu0 %v632
    %878 = vmatpush.bf16.msra.mxu0 %v630
    %879 = vmatpush.bf16.msra.mxu0 %v628
    %880 = vmatpush.bf16.msra.mxu0 %v626
    %881 = vmatpush.bf16.msra.mxu0 %v624
    %882 = vmatmul.bf16.gmra.mxu0 %v68
    %v883 = vpop.f32.mrf.mxu0
    %v884 = vadd.f32 %v871, %v883
    %v885 = vpop.f32.mrf.mxu0
    %886 = vdwg.mxu0
    %887 = vmatpush.bf16.msra.mxu0 %v654
    %888 = vmatpush.bf16.msra.mxu0 %v652
    %889 = vmatpush.bf16.msra.mxu0 %v650
    %890 = vmatpush.bf16.msra.mxu0 %v648
    %891 = vmatpush.bf16.msra.mxu0 %v646
    %892 = vmatpush.bf16.msra.mxu0 %v644
    %893 = vmatpush.bf16.msra.mxu0 %v642
    %894 = vmatpush.bf16.msra.mxu0 %v640
    %895 = vmatmul.bf16.gmra.mxu0 %v69
    %v896 = vpop.f32.mrf.mxu0
    %v897 = vadd.f32 %v884, %v896
    %v898 = vpop.f32.mrf.mxu0
    %899 = vdwg.mxu0
    %900 = vmatpush.bf16.msra.mxu0 %v670
    %901 = vmatpush.bf16.msra.mxu0 %v668
    %902 = vmatpush.bf16.msra.mxu0 %v666
    %903 = vmatpush.bf16.msra.mxu0 %v664
    %904 = vmatpush.bf16.msra.mxu0 %v662
    %905 = vmatpush.bf16.msra.mxu0 %v660
    %906 = vmatpush.bf16.msra.mxu0 %v658
    %907 = vmatpush.bf16.msra.mxu0 %v656
    %908 = vmatmul.bf16.gmra.mxu0 %v70
    %v909 = vpop.f32.mrf.mxu0
    %v910 = vadd.f32 %v897, %v909
    %v911 = vpop.f32.mrf.mxu0
    %912 = vdwg.mxu0
    %913 = vmatpush.bf16.msra.mxu0 %v686
    %914 = vmatpush.bf16.msra.mxu0 %v684
    %915 = vmatpush.bf16.msra.mxu0 %v682
    %916 = vmatpush.bf16.msra.mxu0 %v680
    %917 = vmatpush.bf16.msra.mxu0 %v678
    %918 = vmatpush.bf16.msra.mxu0 %v676
    %919 = vmatpush.bf16.msra.mxu0 %v674
    %920 = vmatpush.bf16.msra.mxu0 %v672
    %921 = vmatmul.bf16.gmra.mxu0 %v71
    %v922 = vpop.f32.mrf.mxu0
    %v923 = vadd.f32 %v910, %v922
    %v924 = vpop.f32.mrf.mxu0
    %925 = vdwg.mxu0
    %926 = vmatpush.bf16.msra.mxu0 %v702
    %927 = vmatpush.bf16.msra.mxu0 %v700
    %928 = vmatpush.bf16.msra.mxu0 %v698
    %929 = vmatpush.bf16.msra.mxu0 %v696
    %930 = vmatpush.bf16.msra.mxu0 %v694
    %931 = vmatpush.bf16.msra.mxu0 %v692
    %932 = vmatpush.bf16.msra.mxu0 %v690
    %933 = vmatpush.bf16.msra.mxu0 %v688
    %934 = vmatmul.bf16.gmra.mxu0 %v72
    %v935 = vpop.f32.mrf.mxu0
    %v936 = vadd.f32 %v923, %v935
    %v937 = vpop.f32.mrf.mxu0
    %938 = vdwg.mxu0
    %939 = vmatpush.bf16.msra.mxu0 %v718
    %940 = vmatpush.bf16.msra.mxu0 %v716
    %941 = vmatpush.bf16.msra.mxu0 %v714
    %942 = vmatpush.bf16.msra.mxu0 %v712
    %943 = vmatpush.bf16.msra.mxu0 %v710
    %944 = vmatpush.bf16.msra.mxu0 %v708
    %945 = vmatpush.bf16.msra.mxu0 %v706
    %946 = vmatpush.bf16.msra.mxu0 %v704
    %947 = vmatmul.bf16.gmra.mxu0 %v73
    %v948 = vpop.f32.mrf.mxu0
    %v949 = vadd.f32 %v936, %v948
    %v950 = vpop.f32.mrf.mxu0
    %951 = vdwg.mxu0
    %952 = vmatpush.bf16.msra.mxu0 %v607
    %953 = vmatpush.bf16.msra.mxu0 %v605
    %954 = vmatpush.bf16.msra.mxu0 %v603
    %955 = vmatpush.bf16.msra.mxu0 %v601
    %956 = vmatpush.bf16.msra.mxu0 %v599
    %957 = vmatpush.bf16.msra.mxu0 %v597
    %958 = vmatpush.bf16.msra.mxu0 %v595
    %959 = vmatpush.bf16.msra.mxu0 %v593
    %960 = vmatmul.bf16.gmra.mxu0 %v66
    %v961 = vpop.f32.mrf.mxu0
    %v962 = vadd.f32 %v205, %v961
    %v963 = vpop.f32.mrf.mxu0
    %964 = vdwg.mxu0
    %965 = vmatpush.bf16.msra.mxu0 %v623
    %966 = vmatpush.bf16.msra.mxu0 %v621
    %967 = vmatpush.bf16.msra.mxu0 %v619
    %968 = vmatpush.bf16.msra.mxu0 %v617
    %969 = vmatpush.bf16.msra.mxu0 %v615
    %970 = vmatpush.bf16.msra.mxu0 %v613
    %971 = vmatpush.bf16.msra.mxu0 %v611
    %972 = vmatpush.bf16.msra.mxu0 %v609
    %973 = vmatmul.bf16.gmra.mxu0 %v67
    %v974 = vpop.f32.mrf.mxu0
    %v975 = vadd.f32 %v962, %v974
    %v976 = vpop.f32.mrf.mxu0
    %977 = vdwg.mxu0
    %978 = vmatpush.bf16.msra.mxu0 %v639
    %979 = vmatpush.bf16.msra.mxu0 %v637
    %980 = vmatpush.bf16.msra.mxu0 %v635
    %981 = vmatpush.bf16.msra.mxu0 %v633
    %982 = vmatpush.bf16.msra.mxu0 %v631
    %983 = vmatpush.bf16.msra.mxu0 %v629
    %984 = vmatpush.bf16.msra.mxu0 %v627
    %985 = vmatpush.bf16.msra.mxu0 %v625
    %986 = vmatmul.bf16.gmra.mxu0 %v68
    %v987 = vpop.f32.mrf.mxu0
    %v988 = vadd.f32 %v975, %v987
    %v989 = vpop.f32.mrf.mxu0
    %990 = vdwg.mxu0
    %991 = vmatpush.bf16.msra.mxu0 %v655
    %992 = vmatpush.bf16.msra.mxu0 %v653
    %993 = vmatpush.bf16.msra.mxu0 %v651
    %994 = vmatpush.bf16.msra.mxu0 %v649
    %995 = vmatpush.bf16.msra.mxu0 %v647
    %996 = vmatpush.bf16.msra.mxu0 %v645
    %997 = vmatpush.bf16.msra.mxu0 %v643
    %998 = vmatpush.bf16.msra.mxu0 %v641
    %999 = vmatmul.bf16.gmra.mxu0 %v69
    %v1000 = vpop.f32.mrf.mxu0
    %v1001 = vadd.f32 %v988, %v1000
    %v1002 = vpop.f32.mrf.mxu0
    %1003 = vdwg.mxu0
    %1004 = vmatpush.bf16.msra.mxu0 %v671
    %1005 = vmatpush.bf16.msra.mxu0 %v669
    %1006 = vmatpush.bf16.msra.mxu0 %v667
    %1007 = vmatpush.bf16.msra.mxu0 %v665
    %1008 = vmatpush.bf16.msra.mxu0 %v663
    %1009 = vmatpush.bf16.msra.mxu0 %v661
    %1010 = vmatpush.bf16.msra.mxu0 %v659
    %1011 = vmatpush.bf16.msra.mxu0 %v657
    %1012 = vmatmul.bf16.gmra.mxu0 %v70
    %v1013 = vpop.f32.mrf.mxu0
    %v1014 = vadd.f32 %v1001, %v1013
    %v1015 = vpop.f32.mrf.mxu0
    %1016 = vdwg.mxu0
    %1017 = vmatpush.bf16.msra.mxu0 %v687
    %1018 = vmatpush.bf16.msra.mxu0 %v685
    %1019 = vmatpush.bf16.msra.mxu0 %v683
    %1020 = vmatpush.bf16.msra.mxu0 %v681
    %1021 = vmatpush.bf16.msra.mxu0 %v679
    %1022 = vmatpush.bf16.msra.mxu0 %v677
    %1023 = vmatpush.bf16.msra.mxu0 %v675
    %1024 = vmatpush.bf16.msra.mxu0 %v673
    %1025 = vmatmul.bf16.gmra.mxu0 %v71
    %v1026 = vpop.f32.mrf.mxu0
    %v1027 = vadd.f32 %v1014, %v1026
    %v1028 = vpop.f32.mrf.mxu0
    %1029 = vdwg.mxu0
    %1030 = vmatpush.bf16.msra.mxu0 %v703
    %1031 = vmatpush.bf16.msra.mxu0 %v701
    %1032 = vmatpush.bf16.msra.mxu0 %v699
    %1033 = vmatpush.bf16.msra.mxu0 %v697
    %1034 = vmatpush.bf16.msra.mxu0 %v695
    %1035 = vmatpush.bf16.msra.mxu0 %v693
    %1036 = vmatpush.bf16.msra.mxu0 %v691
    %1037 = vmatpush.bf16.msra.mxu0 %v689
    %1038 = vmatmul.bf16.gmra.mxu0 %v72
    %v1039 = vpop.f32.mrf.mxu0
    %v1040 = vadd.f32 %v1027, %v1039
    %v1041 = vpop.f32.mrf.mxu0
    %1042 = vdwg.mxu0
    %1043 = vmatpush.bf16.msra.mxu0 %v719
    %1044 = vmatpush.bf16.msra.mxu0 %v717
    %1045 = vmatpush.bf16.msra.mxu0 %v715
    %1046 = vmatpush.bf16.msra.mxu0 %v713
    %1047 = vmatpush.bf16.msra.mxu0 %v711
    %1048 = vmatpush.bf16.msra.mxu0 %v709
    %1049 = vmatpush.bf16.msra.mxu0 %v707
    %1050 = vmatpush.bf16.msra.mxu0 %v705
    %1051 = vmatmul.bf16.gmra.mxu0 %v73
    %v1052 = vpop.f32.mrf.mxu0
    %v1053 = vadd.f32 %v1040, %v1052
    %v1054 = vpop.f32.mrf.mxu0
    %1055 = vdwg.mxu0
    %v1056 = vmax.f32 %v949, 0.0
    %v1057 = vmax.f32 %v1053, 0.0
    %v1058 = vpack.c.bf16 %v1057, %v1056
    %v1059 = vld [vmem:[%s4] sm:$0x3]
    %v1060 = vld [vmem:[%s4 + $0x2] sm:$0x3]
    %v1061 = vld [vmem:[%s4 + $0x4] sm:$0x3]
    %v1065 = vperm.slane %v1059, 0
    %v1066 = vperm.slane %v1059, 1
    %v1067 = vperm.slane %v1060, 0
    %v1068 = vperm.slane %v1060, 1
    %v1069 = vperm.slane %v1061, 0
    %v1070 = vperm.slane %v1061, 1
    %v1077 = vpack.c.bf16 %v1066, %v1065
    %v1078 = vpack.c.bf16 %v1068, %v1067
    %v1079 = vpack.c.bf16 %v1070, %v1069
    %v1080 = vld [vmem:[#allocation4] sm:$0xff]
    %v1081 = vld [vmem:[#allocation4 + $0x8] sm:$0xff]
    %v1082 = vld [vmem:[#allocation4 + $0x10] sm:$0xff]
    %v1083 = vld [vmem:[#allocation4 + $0x18] sm:$0xff]
    %v1084 = vld [vmem:[#allocation4 + $0x20] sm:$0xff]
    %v1085 = vld [vmem:[#allocation4 + $0x28] sm:$0xff]
    %v1086 = vld [vmem:[#allocation4 + $0x30] sm:$0xff]
    %v1087 = vld [vmem:[#allocation4 + $0x38] sm:$0xff]
    %v1088 = vld [vmem:[#allocation4 + $0x40] sm:$0xff]
    %v1089 = vld [vmem:[#allocation4 + $0x48] sm:$0xff]
    %v1090 = vld [vmem:[#allocation4 + $0x50] sm:$0xff]
    %v1091 = vld [vmem:[#allocation4 + $0x58] sm:$0xff]
    %v1092 = vld [vmem:[#allocation4 + $0x60] sm:$0xff]
    %v1093 = vld [vmem:[#allocation4 + $0x68] sm:$0xff]
    %v1094 = vld [vmem:[#allocation4 + $0x70] sm:$0xff]
    %v1095 = vld [vmem:[#allocation4 + $0x78] sm:$0xff]
    %v1096 = vld [vmem:[#allocation4 + $0x80] sm:$0xff]
    %v1097 = vld [vmem:[#allocation4 + $0x88] sm:$0xff]
    %v1098 = vld [vmem:[#allocation4 + $0x90] sm:$0xff]
    %v1099 = vld [vmem:[#allocation4 + $0x98] sm:$0xff]
    %v1100 = vld [vmem:[#allocation4 + $0xa0] sm:$0xff]
    %v1101 = vld [vmem:[#allocation4 + $0xa8] sm:$0xff]
    %v1102 = vld [vmem:[#allocation4 + $0xb0] sm:$0xff]
    %v1103 = vld [vmem:[#allocation4 + $0xb8] sm:$0xff]
    %v1104 = vld [vmem:[#allocation4 + $0xc0] sm:$0xff]
    %v1105 = vld [vmem:[#allocation4 + $0xc8] sm:$0xff]
    %v1106 = vld [vmem:[#allocation4 + $0xd0] sm:$0xff]
    %v1107 = vld [vmem:[#allocation4 + $0xd8] sm:$0xff]
    %v1108 = vld [vmem:[#allocation4 + $0xe0] sm:$0xff]
    %v1109 = vld [vmem:[#allocation4 + $0xe8] sm:$0xff]
    %v1110 = vld [vmem:[#allocation4 + $0xf0] sm:$0xff]
    %v1111 = vld [vmem:[#allocation4 + $0xf8] sm:$0xff]
    %v1113 = vunpack.c.l.b16 %v1058
    %v1114 = vunpack.c.h.b16 %v1058
    %v1115 = vpack.c.b16 %v1113, %v1113
    %v1116 = vpack.c.b16 %v1114, %v1114
    %v1151 = vunpack.c.l.b16 %v1080
    %v1152 = vunpack.c.h.b16 %v1080
    %v1153 = vunpack.c.l.b16 %v1081
    %v1154 = vunpack.c.h.b16 %v1081
    %v1155 = vunpack.c.l.b16 %v1082
    %v1156 = vunpack.c.h.b16 %v1082
    %v1157 = vunpack.c.l.b16 %v1083
    %v1158 = vunpack.c.h.b16 %v1083
    %v1159 = vunpack.c.l.b16 %v1084
    %v1160 = vunpack.c.h.b16 %v1084
    %v1161 = vunpack.c.l.b16 %v1085
    %v1162 = vunpack.c.h.b16 %v1085
    %v1163 = vunpack.c.l.b16 %v1086
    %v1164 = vunpack.c.h.b16 %v1086
    %v1165 = vunpack.c.l.b16 %v1087
    %v1166 = vunpack.c.h.b16 %v1087
    %v1167 = vunpack.c.l.b16 %v1088
    %v1168 = vunpack.c.h.b16 %v1088
    %v1169 = vunpack.c.l.b16 %v1089
    %v1170 = vunpack.c.h.b16 %v1089
    %v1171 = vunpack.c.l.b16 %v1090
    %v1172 = vunpack.c.h.b16 %v1090
    %v1173 = vunpack.c.l.b16 %v1091
    %v1174 = vunpack.c.h.b16 %v1091
    %v1175 = vunpack.c.l.b16 %v1092
    %v1176 = vunpack.c.h.b16 %v1092
    %v1177 = vunpack.c.l.b16 %v1093
    %v1178 = vunpack.c.h.b16 %v1093
    %v1179 = vunpack.c.l.b16 %v1094
    %v1180 = vunpack.c.h.b16 %v1094
    %v1181 = vunpack.c.l.b16 %v1095
    %v1182 = vunpack.c.h.b16 %v1095
    %v1183 = vunpack.c.l.b16 %v1096
    %v1184 = vunpack.c.h.b16 %v1096
    %v1185 = vunpack.c.l.b16 %v1097
    %v1186 = vunpack.c.h.b16 %v1097
    %v1187 = vunpack.c.l.b16 %v1098
    %v1188 = vunpack.c.h.b16 %v1098
    %v1189 = vunpack.c.l.b16 %v1099
    %v1190 = vunpack.c.h.b16 %v1099
    %v1191 = vunpack.c.l.b16 %v1100
    %v1192 = vunpack.c.h.b16 %v1100
    %v1193 = vunpack.c.l.b16 %v1101
    %v1194 = vunpack.c.h.b16 %v1101
    %v1195 = vunpack.c.l.b16 %v1102
    %v1196 = vunpack.c.h.b16 %v1102
    %v1197 = vunpack.c.l.b16 %v1103
    %v1198 = vunpack.c.h.b16 %v1103
    %v1199 = vunpack.c.l.b16 %v1104
    %v1200 = vunpack.c.h.b16 %v1104
    %v1201 = vunpack.c.l.b16 %v1105
    %v1202 = vunpack.c.h.b16 %v1105
    %v1203 = vunpack.c.l.b16 %v1106
    %v1204 = vunpack.c.h.b16 %v1106
    %v1205 = vunpack.c.l.b16 %v1107
    %v1206 = vunpack.c.h.b16 %v1107
    %v1207 = vunpack.c.l.b16 %v1108
    %v1208 = vunpack.c.h.b16 %v1108
    %v1209 = vunpack.c.l.b16 %v1109
    %v1210 = vunpack.c.h.b16 %v1109
    %v1211 = vunpack.c.l.b16 %v1110
    %v1212 = vunpack.c.h.b16 %v1110
    %v1213 = vunpack.c.l.b16 %v1111
    %v1214 = vunpack.c.h.b16 %v1111
    %v1215 = vpack.c.b16 %v1153, %v1151
    %v1216 = vpack.c.b16 %v1154, %v1152
    %v1217 = vpack.c.b16 %v1157, %v1155
    %v1218 = vpack.c.b16 %v1158, %v1156
    %v1219 = vpack.c.b16 %v1161, %v1159
    %v1220 = vpack.c.b16 %v1162, %v1160
    %v1221 = vpack.c.b16 %v1165, %v1163
    %v1222 = vpack.c.b16 %v1166, %v1164
    %v1223 = vpack.c.b16 %v1169, %v1167
    %v1224 = vpack.c.b16 %v1170, %v1168
    %v1225 = vpack.c.b16 %v1173, %v1171
    %v1226 = vpack.c.b16 %v1174, %v1172
    %v1227 = vpack.c.b16 %v1177, %v1175
    %v1228 = vpack.c.b16 %v1178, %v1176
    %v1229 = vpack.c.b16 %v1181, %v1179
    %v1230 = vpack.c.b16 %v1182, %v1180
    %v1231 = vpack.c.b16 %v1185, %v1183
    %v1232 = vpack.c.b16 %v1186, %v1184
    %v1233 = vpack.c.b16 %v1189, %v1187
    %v1234 = vpack.c.b16 %v1190, %v1188
    %v1235 = vpack.c.b16 %v1193, %v1191
    %v1236 = vpack.c.b16 %v1194, %v1192
    %v1237 = vpack.c.b16 %v1197, %v1195
    %v1238 = vpack.c.b16 %v1198, %v1196
    %v1239 = vpack.c.b16 %v1201, %v1199
    %v1240 = vpack.c.b16 %v1202, %v1200
    %v1241 = vpack.c.b16 %v1205, %v1203
    %v1242 = vpack.c.b16 %v1206, %v1204
    %v1243 = vpack.c.b16 %v1209, %v1207
    %v1244 = vpack.c.b16 %v1210, %v1208
    %v1245 = vpack.c.b16 %v1213, %v1211
    %v1246 = vpack.c.b16 %v1214, %v1212
    %1279 = vmatpush.bf16.msra.mxu0 %v1229
    %1280 = vmatpush.bf16.msra.mxu0 %v1227
    %1281 = vmatpush.bf16.msra.mxu0 %v1225
    %1282 = vmatpush.bf16.msra.mxu0 %v1223
    %1283 = vmatpush.bf16.msra.mxu0 %v1221
    %1284 = vmatpush.bf16.msra.mxu0 %v1219
    %1285 = vmatpush.bf16.msra.mxu0 %v1217
    %1286 = vmatpush.bf16.msra.mxu0 %v1215
    %1287 = vmatmul.bf16.gmra.mxu0 %v1115
    %v1288 = vpop.f32.mrf.mxu0
    %v1289 = vadd.f32 0.0, %v1288
    %v1290 = vpop.f32.mrf.mxu0
    %1291 = vdwg.mxu0
    %1292 = vmatpush.bf16.msra.mxu0 %v1245
    %1293 = vmatpush.bf16.msra.mxu0 %v1243
    %1294 = vmatpush.bf16.msra.mxu0 %v1241
    %1295 = vmatpush.bf16.msra.mxu0 %v1239
    %1296 = vmatpush.bf16.msra.mxu0 %v1237
    %1297 = vmatpush.bf16.msra.mxu0 %v1235
    %1298 = vmatpush.bf16.msra.mxu0 %v1233
    %1299 = vmatpush.bf16.msra.mxu0 %v1231
    %1300 = vmatmul.bf16.gmra.mxu0 %v1116
    %v1301 = vpop.f32.mrf.mxu0
    %v1302 = vadd.f32 %v1289, %v1301
    %v1303 = vpop.f32.mrf.mxu0
    %1304 = vdwg.mxu0
    %1305 = vmatpush.bf16.msra.mxu0 %v1230
    %1306 = vmatpush.bf16.msra.mxu0 %v1228
    %1307 = vmatpush.bf16.msra.mxu0 %v1226
    %1308 = vmatpush.bf16.msra.mxu0 %v1224
    %1309 = vmatpush.bf16.msra.mxu0 %v1222
    %1310 = vmatpush.bf16.msra.mxu0 %v1220
    %1311 = vmatpush.bf16.msra.mxu0 %v1218
    %1312 = vmatpush.bf16.msra.mxu0 %v1216
    %1313 = vmatmul.bf16.gmra.mxu0 %v1115
    %v1314 = vpop.f32.mrf.mxu0
    %v1315 = vadd.f32 0.0, %v1314
    %v1316 = vpop.f32.mrf.mxu0
    %1317 = vdwg.mxu0
    %1318 = vmatpush.bf16.msra.mxu0 %v1246
    %1319 = vmatpush.bf16.msra.mxu0 %v1244
    %1320 = vmatpush.bf16.msra.mxu0 %v1242
    %1321 = vmatpush.bf16.msra.mxu0 %v1240
    %1322 = vmatpush.bf16.msra.mxu0 %v1238
    %1323 = vmatpush.bf16.msra.mxu0 %v1236
    %1324 = vmatpush.bf16.msra.mxu0 %v1234
    %1325 = vmatpush.bf16.msra.mxu0 %v1232
    %1326 = vmatmul.bf16.gmra.mxu0 %v1116
    %v1327 = vpop.f32.mrf.mxu0
    %v1328 = vadd.f32 %v1315, %v1327
    %v1329 = vpop.f32.mrf.mxu0
    %1330 = vdwg.mxu0
    %v1331 = vpack.c.bf16 %v1328, %v1302
    %v1333 = vunpack.c.l.b16 %v1077
    %v1334 = vunpack.c.h.b16 %v1077
    %v1335 = vpack.c.b16 %v1333, %v1333
    %v1336 = vpack.c.b16 %v1334, %v1334
    %v1338 = vpack.i.b16 %v1335, %v1335
    %v1340 = vperm.slane %v1338, 0
    %v1342 = vpack.i.b16 %v1336, %v1336
    %v1344 = vperm.slane %v1342, 0
    %v1345 = vunpack.c.l.bf16 %v1331
    %v1346 = vunpack.c.h.bf16 %v1331
    %v1347 = vunpack.c.l.bf16 %v1340
    %v1348 = vunpack.c.l.bf16 %v1344
    %v1349 = vadd.f32 %v1345, %v1347
    %v1350 = vadd.f32 %v1346, %v1348
    %v1351 = vpack.c.bf16 %v1350, %v1349
    %v1352 = vunpack.c.l.bf16 %v1351
    %v1353 = vunpack.c.h.bf16 %v1351
    %v1354 = vmax.f32 %v1352, 0.0
    %v1355 = vmax.f32 %v1353, 0.0
    %v1356 = vpack.c.bf16 %v1355, %v1354
    %v1357 = vunpack.c.l.bf16 %v1356
    %v1358 = vunpack.c.h.bf16 %v1356
    %v1359 = vunpack.c.l.bf16 %v1058
    %v1360 = vunpack.c.h.bf16 %v1058
    %v1361 = vadd.f32 %v1357, %v1359
    %v1362 = vadd.f32 %v1358, %v1360
    %v1363 = vpack.c.bf16 %v1362, %v1361
    %s1364 = scalar_lea.vmem [#allocation4], 256
    %v1365 = vld [vmem:[%s1364] sm:$0xff]
    %v1366 = vld [vmem:[%s1364 + $0x8] sm:$0xff]
    %v1367 = vld [vmem:[%s1364 + $0x10] sm:$0xff]
    %v1368 = vld [vmem:[%s1364 + $0x18] sm:$0xff]
    %v1369 = vld [vmem:[%s1364 + $0x20] sm:$0xff]
    %v1370 = vld [vmem:[%s1364 + $0x28] sm:$0xff]
    %v1371 = vld [vmem:[%s1364 + $0x30] sm:$0xff]
    %v1372 = vld [vmem:[%s1364 + $0x38] sm:$0xff]
    %v1373 = vld [vmem:[%s1364 + $0x40] sm:$0xff]
    %v1374 = vld [vmem:[%s1364 + $0x48] sm:$0xff]
    %v1375 = vld [vmem:[%s1364 + $0x50] sm:$0xff]
    %v1376 = vld [vmem:[%s1364 + $0x58] sm:$0xff]
    %v1377 = vld [vmem:[%s1364 + $0x60] sm:$0xff]
    %v1378 = vld [vmem:[%s1364 + $0x68] sm:$0xff]
    %v1379 = vld [vmem:[%s1364 + $0x70] sm:$0xff]
    %v1380 = vld [vmem:[%s1364 + $0x78] sm:$0xff]
    %v1381 = vld [vmem:[%s1364 + $0x80] sm:$0xff]
    %v1382 = vld [vmem:[%s1364 + $0x88] sm:$0xff]
    %v1383 = vld [vmem:[%s1364 + $0x90] sm:$0xff]
    %v1384 = vld [vmem:[%s1364 + $0x98] sm:$0xff]
    %v1385 = vld [vmem:[%s1364 + $0xa0] sm:$0xff]
    %v1386 = vld [vmem:[%s1364 + $0xa8] sm:$0xff]
    %v1387 = vld [vmem:[%s1364 + $0xb0] sm:$0xff]
    %v1388 = vld [vmem:[%s1364 + $0xb8] sm:$0xff]
    %v1389 = vld [vmem:[%s1364 + $0xc0] sm:$0xff]
    %v1390 = vld [vmem:[%s1364 + $0xc8] sm:$0xff]
    %v1391 = vld [vmem:[%s1364 + $0xd0] sm:$0xff]
    %v1392 = vld [vmem:[%s1364 + $0xd8] sm:$0xff]
    %v1393 = vld [vmem:[%s1364 + $0xe0] sm:$0xff]
    %v1394 = vld [vmem:[%s1364 + $0xe8] sm:$0xff]
    %v1395 = vld [vmem:[%s1364 + $0xf0] sm:$0xff]
    %v1396 = vld [vmem:[%s1364 + $0xf8] sm:$0xff]
    %v1398 = vunpack.c.l.b16 %v1363
    %v1399 = vunpack.c.h.b16 %v1363
    %v1400 = vpack.c.b16 %v1398, %v1398
    %v1401 = vpack.c.b16 %v1399, %v1399
    %v1436 = vunpack.c.l.b16 %v1365
    %v1437 = vunpack.c.h.b16 %v1365
    %v1438 = vunpack.c.l.b16 %v1366
    %v1439 = vunpack.c.h.b16 %v1366
    %v1440 = vunpack.c.l.b16 %v1367
    %v1441 = vunpack.c.h.b16 %v1367
    %v1442 = vunpack.c.l.b16 %v1368
    %v1443 = vunpack.c.h.b16 %v1368
    %v1444 = vunpack.c.l.b16 %v1369
    %v1445 = vunpack.c.h.b16 %v1369
    %v1446 = vunpack.c.l.b16 %v1370
    %v1447 = vunpack.c.h.b16 %v1370
    %v1448 = vunpack.c.l.b16 %v1371
    %v1449 = vunpack.c.h.b16 %v1371
    %v1450 = vunpack.c.l.b16 %v1372
    %v1451 = vunpack.c.h.b16 %v1372
    %v1452 = vunpack.c.l.b16 %v1373
    %v1453 = vunpack.c.h.b16 %v1373
    %v1454 = vunpack.c.l.b16 %v1374
    %v1455 = vunpack.c.h.b16 %v1374
    %v1456 = vunpack.c.l.b16 %v1375
    %v1457 = vunpack.c.h.b16 %v1375
    %v1458 = vunpack.c.l.b16 %v1376
    %v1459 = vunpack.c.h.b16 %v1376
    %v1460 = vunpack.c.l.b16 %v1377
    %v1461 = vunpack.c.h.b16 %v1377
    %v1462 = vunpack.c.l.b16 %v1378
    %v1463 = vunpack.c.h.b16 %v1378
    %v1464 = vunpack.c.l.b16 %v1379
    %v1465 = vunpack.c.h.b16 %v1379
    %v1466 = vunpack.c.l.b16 %v1380
    %v1467 = vunpack.c.h.b16 %v1380
    %v1468 = vunpack.c.l.b16 %v1381
    %v1469 = vunpack.c.h.b16 %v1381
    %v1470 = vunpack.c.l.b16 %v1382
    %v1471 = vunpack.c.h.b16 %v1382
    %v1472 = vunpack.c.l.b16 %v1383
    %v1473 = vunpack.c.h.b16 %v1383
    %v1474 = vunpack.c.l.b16 %v1384
    %v1475 = vunpack.c.h.b16 %v1384
    %v1476 = vunpack.c.l.b16 %v1385
    %v1477 = vunpack.c.h.b16 %v1385
    %v1478 = vunpack.c.l.b16 %v1386
    %v1479 = vunpack.c.h.b16 %v1386
    %v1480 = vunpack.c.l.b16 %v1387
    %v1481 = vunpack.c.h.b16 %v1387
    %v1482 = vunpack.c.l.b16 %v1388
    %v1483 = vunpack.c.h.b16 %v1388
    %v1484 = vunpack.c.l.b16 %v1389
    %v1485 = vunpack.c.h.b16 %v1389
    %v1486 = vunpack.c.l.b16 %v1390
    %v1487 = vunpack.c.h.b16 %v1390
    %v1488 = vunpack.c.l.b16 %v1391
    %v1489 = vunpack.c.h.b16 %v1391
    %v1490 = vunpack.c.l.b16 %v1392
    %v1491 = vunpack.c.h.b16 %v1392
    %v1492 = vunpack.c.l.b16 %v1393
    %v1493 = vunpack.c.h.b16 %v1393
    %v1494 = vunpack.c.l.b16 %v1394
    %v1495 = vunpack.c.h.b16 %v1394
    %v1496 = vunpack.c.l.b16 %v1395
    %v1497 = vunpack.c.h.b16 %v1395
    %v1498 = vunpack.c.l.b16 %v1396
    %v1499 = vunpack.c.h.b16 %v1396
    %v1500 = vpack.c.b16 %v1438, %v1436
    %v1501 = vpack.c.b16 %v1439, %v1437
    %v1502 = vpack.c.b16 %v1442, %v1440
    %v1503 = vpack.c.b16 %v1443, %v1441
    %v1504 = vpack.c.b16 %v1446, %v1444
    %v1505 = vpack.c.b16 %v1447, %v1445
    %v1506 = vpack.c.b16 %v1450, %v1448
    %v1507 = vpack.c.b16 %v1451, %v1449
    %v1508 = vpack.c.b16 %v1454, %v1452
    %v1509 = vpack.c.b16 %v1455, %v1453
    %v1510 = vpack.c.b16 %v1458, %v1456
    %v1511 = vpack.c.b16 %v1459, %v1457
    %v1512 = vpack.c.b16 %v1462, %v1460
    %v1513 = vpack.c.b16 %v1463, %v1461
    %v1514 = vpack.c.b16 %v1466, %v1464
    %v1515 = vpack.c.b16 %v1467, %v1465
    %v1516 = vpack.c.b16 %v1470, %v1468
    %v1517 = vpack.c.b16 %v1471, %v1469
    %v1518 = vpack.c.b16 %v1474, %v1472
    %v1519 = vpack.c.b16 %v1475, %v1473
    %v1520 = vpack.c.b16 %v1478, %v1476
    %v1521 = vpack.c.b16 %v1479, %v1477
    %v1522 = vpack.c.b16 %v1482, %v1480
    %v1523 = vpack.c.b16 %v1483, %v1481
    %v1524 = vpack.c.b16 %v1486, %v1484
    %v1525 = vpack.c.b16 %v1487, %v1485
    %v1526 = vpack.c.b16 %v1490, %v1488
    %v1527 = vpack.c.b16 %v1491, %v1489
    %v1528 = vpack.c.b16 %v1494, %v1492
    %v1529 = vpack.c.b16 %v1495, %v1493
    %v1530 = vpack.c.b16 %v1498, %v1496
    %v1531 = vpack.c.b16 %v1499, %v1497
    %1564 = vmatpush.bf16.msra.mxu0 %v1514
    %1565 = vmatpush.bf16.msra.mxu0 %v1512
    %1566 = vmatpush.bf16.msra.mxu0 %v1510
    %1567 = vmatpush.bf16.msra.mxu0 %v1508
    %1568 = vmatpush.bf16.msra.mxu0 %v1506
    %1569 = vmatpush.bf16.msra.mxu0 %v1504
    %1570 = vmatpush.bf16.msra.mxu0 %v1502
    %1571 = vmatpush.bf16.msra.mxu0 %v1500
    %1572 = vmatmul.bf16.gmra.mxu0 %v1400
    %v1573 = vpop.f32.mrf.mxu0
    %v1574 = vadd.f32 0.0, %v1573
    %v1575 = vpop.f32.mrf.mxu0
    %1576 = vdwg.mxu0
    %1577 = vmatpush.bf16.msra.mxu0 %v1530
    %1578 = vmatpush.bf16.msra.mxu0 %v1528
    %1579 = vmatpush.bf16.msra.mxu0 %v1526
    %1580 = vmatpush.bf16.msra.mxu0 %v1524
    %1581 = vmatpush.bf16.msra.mxu0 %v1522
    %1582 = vmatpush.bf16.msra.mxu0 %v1520
    %1583 = vmatpush.bf16.msra.mxu0 %v1518
    %1584 = vmatpush.bf16.msra.mxu0 %v1516
    %1585 = vmatmul.bf16.gmra.mxu0 %v1401
    %v1586 = vpop.f32.mrf.mxu0
    %v1587 = vadd.f32 %v1574, %v1586
    %v1588 = vpop.f32.mrf.mxu0
    %1589 = vdwg.mxu0
    %1590 = vmatpush.bf16.msra.mxu0 %v1515
    %1591 = vmatpush.bf16.msra.mxu0 %v1513
    %1592 = vmatpush.bf16.msra.mxu0 %v1511
    %1593 = vmatpush.bf16.msra.mxu0 %v1509
    %1594 = vmatpush.bf16.msra.mxu0 %v1507
    %1595 = vmatpush.bf16.msra.mxu0 %v1505
    %1596 = vmatpush.bf16.msra.mxu0 %v1503
    %1597 = vmatpush.bf16.msra.mxu0 %v1501
    %1598 = vmatmul.bf16.gmra.mxu0 %v1400
    %v1599 = vpop.f32.mrf.mxu0
    %v1600 = vadd.f32 0.0, %v1599
    %v1601 = vpop.f32.mrf.mxu0
    %1602 = vdwg.mxu0
    %1603 = vmatpush.bf16.msra.mxu0 %v1531
    %1604 = vmatpush.bf16.msra.mxu0 %v1529
    %1605 = vmatpush.bf16.msra.mxu0 %v1527
    %1606 = vmatpush.bf16.msra.mxu0 %v1525
    %1607 = vmatpush.bf16.msra.mxu0 %v1523
    %1608 = vmatpush.bf16.msra.mxu0 %v1521
    %1609 = vmatpush.bf16.msra.mxu0 %v1519
    %1610 = vmatpush.bf16.msra.mxu0 %v1517
    %1611 = vmatmul.bf16.gmra.mxu0 %v1401
    %v1612 = vpop.f32.mrf.mxu0
    %v1613 = vadd.f32 %v1600, %v1612
    %v1614 = vpop.f32.mrf.mxu0
    %1615 = vdwg.mxu0
    %v1616 = vpack.c.bf16 %v1613, %v1587
    %v1618 = vunpack.c.l.b16 %v1078
    %v1619 = vunpack.c.h.b16 %v1078
    %v1620 = vpack.c.b16 %v1618, %v1618
    %v1621 = vpack.c.b16 %v1619, %v1619
    %v1623 = vpack.i.b16 %v1620, %v1620
    %v1625 = vperm.slane %v1623, 0
    %v1627 = vpack.i.b16 %v1621, %v1621
    %v1629 = vperm.slane %v1627, 0
    %v1630 = vunpack.c.l.bf16 %v1616
    %v1631 = vunpack.c.h.bf16 %v1616
    %v1632 = vunpack.c.l.bf16 %v1625
    %v1633 = vunpack.c.l.bf16 %v1629
    %v1634 = vadd.f32 %v1630, %v1632
    %v1635 = vadd.f32 %v1631, %v1633
    %v1636 = vpack.c.bf16 %v1635, %v1634
    %v1637 = vunpack.c.l.bf16 %v1636
    %v1638 = vunpack.c.h.bf16 %v1636
    %v1639 = vmax.f32 %v1637, 0.0
    %v1640 = vmax.f32 %v1638, 0.0
    %v1641 = vpack.c.bf16 %v1640, %v1639
    %v1642 = vunpack.c.l.bf16 %v1641
    %v1643 = vunpack.c.h.bf16 %v1641
    %v1644 = vunpack.c.l.bf16 %v1363
    %v1645 = vunpack.c.h.bf16 %v1363
    %v1646 = vadd.f32 %v1642, %v1644
    %v1647 = vadd.f32 %v1643, %v1645
    %v1648 = vpack.c.bf16 %v1647, %v1646
    %s1649 = scalar_lea.vmem [#allocation4], 512
    %v1650 = vld [vmem:[%s1649] sm:$0xff]
    %v1651 = vld [vmem:[%s1649 + $0x8] sm:$0xff]
    %v1652 = vld [vmem:[%s1649 + $0x10] sm:$0xff]
    %v1653 = vld [vmem:[%s1649 + $0x18] sm:$0xff]
    %v1654 = vld [vmem:[%s1649 + $0x20] sm:$0xff]
    %v1655 = vld [vmem:[%s1649 + $0x28] sm:$0xff]
    %v1656 = vld [vmem:[%s1649 + $0x30] sm:$0xff]
    %v1657 = vld [vmem:[%s1649 + $0x38] sm:$0xff]
    %v1658 = vld [vmem:[%s1649 + $0x40] sm:$0xff]
    %v1659 = vld [vmem:[%s1649 + $0x48] sm:$0xff]
    %v1660 = vld [vmem:[%s1649 + $0x50] sm:$0xff]
    %v1661 = vld [vmem:[%s1649 + $0x58] sm:$0xff]
    %v1662 = vld [vmem:[%s1649 + $0x60] sm:$0xff]
    %v1663 = vld [vmem:[%s1649 + $0x68] sm:$0xff]
    %v1664 = vld [vmem:[%s1649 + $0x70] sm:$0xff]
    %v1665 = vld [vmem:[%s1649 + $0x78] sm:$0xff]
    %v1666 = vld [vmem:[%s1649 + $0x80] sm:$0xff]
    %v1667 = vld [vmem:[%s1649 + $0x88] sm:$0xff]
    %v1668 = vld [vmem:[%s1649 + $0x90] sm:$0xff]
    %v1669 = vld [vmem:[%s1649 + $0x98] sm:$0xff]
    %v1670 = vld [vmem:[%s1649 + $0xa0] sm:$0xff]
    %v1671 = vld [vmem:[%s1649 + $0xa8] sm:$0xff]
    %v1672 = vld [vmem:[%s1649 + $0xb0] sm:$0xff]
    %v1673 = vld [vmem:[%s1649 + $0xb8] sm:$0xff]
    %v1674 = vld [vmem:[%s1649 + $0xc0] sm:$0xff]
    %v1675 = vld [vmem:[%s1649 + $0xc8] sm:$0xff]
    %v1676 = vld [vmem:[%s1649 + $0xd0] sm:$0xff]
    %v1677 = vld [vmem:[%s1649 + $0xd8] sm:$0xff]
    %v1678 = vld [vmem:[%s1649 + $0xe0] sm:$0xff]
    %v1679 = vld [vmem:[%s1649 + $0xe8] sm:$0xff]
    %v1680 = vld [vmem:[%s1649 + $0xf0] sm:$0xff]
    %v1681 = vld [vmem:[%s1649 + $0xf8] sm:$0xff]
    %v1683 = vunpack.c.l.b16 %v1648
    %v1684 = vunpack.c.h.b16 %v1648
    %v1685 = vpack.c.b16 %v1683, %v1683
    %v1686 = vpack.c.b16 %v1684, %v1684
    %v1721 = vunpack.c.l.b16 %v1650
    %v1722 = vunpack.c.h.b16 %v1650
    %v1723 = vunpack.c.l.b16 %v1651
    %v1724 = vunpack.c.h.b16 %v1651
    %v1725 = vunpack.c.l.b16 %v1652
    %v1726 = vunpack.c.h.b16 %v1652
    %v1727 = vunpack.c.l.b16 %v1653
    %v1728 = vunpack.c.h.b16 %v1653
    %v1729 = vunpack.c.l.b16 %v1654
    %v1730 = vunpack.c.h.b16 %v1654
    %v1731 = vunpack.c.l.b16 %v1655
    %v1732 = vunpack.c.h.b16 %v1655
    %v1733 = vunpack.c.l.b16 %v1656
    %v1734 = vunpack.c.h.b16 %v1656
    %v1735 = vunpack.c.l.b16 %v1657
    %v1736 = vunpack.c.h.b16 %v1657
    %v1737 = vunpack.c.l.b16 %v1658
    %v1738 = vunpack.c.h.b16 %v1658
    %v1739 = vunpack.c.l.b16 %v1659
    %v1740 = vunpack.c.h.b16 %v1659
    %v1741 = vunpack.c.l.b16 %v1660
    %v1742 = vunpack.c.h.b16 %v1660
    %v1743 = vunpack.c.l.b16 %v1661
    %v1744 = vunpack.c.h.b16 %v1661
    %v1745 = vunpack.c.l.b16 %v1662
    %v1746 = vunpack.c.h.b16 %v1662
    %v1747 = vunpack.c.l.b16 %v1663
    %v1748 = vunpack.c.h.b16 %v1663
    %v1749 = vunpack.c.l.b16 %v1664
    %v1750 = vunpack.c.h.b16 %v1664
    %v1751 = vunpack.c.l.b16 %v1665
    %v1752 = vunpack.c.h.b16 %v1665
    %v1753 = vunpack.c.l.b16 %v1666
    %v1754 = vunpack.c.h.b16 %v1666
    %v1755 = vunpack.c.l.b16 %v1667
    %v1756 = vunpack.c.h.b16 %v1667
    %v1757 = vunpack.c.l.b16 %v1668
    %v1758 = vunpack.c.h.b16 %v1668
    %v1759 = vunpack.c.l.b16 %v1669
    %v1760 = vunpack.c.h.b16 %v1669
    %v1761 = vunpack.c.l.b16 %v1670
    %v1762 = vunpack.c.h.b16 %v1670
    %v1763 = vunpack.c.l.b16 %v1671
    %v1764 = vunpack.c.h.b16 %v1671
    %v1765 = vunpack.c.l.b16 %v1672
    %v1766 = vunpack.c.h.b16 %v1672
    %v1767 = vunpack.c.l.b16 %v1673
    %v1768 = vunpack.c.h.b16 %v1673
    %v1769 = vunpack.c.l.b16 %v1674
    %v1770 = vunpack.c.h.b16 %v1674
    %v1771 = vunpack.c.l.b16 %v1675
    %v1772 = vunpack.c.h.b16 %v1675
    %v1773 = vunpack.c.l.b16 %v1676
    %v1774 = vunpack.c.h.b16 %v1676
    %v1775 = vunpack.c.l.b16 %v1677
    %v1776 = vunpack.c.h.b16 %v1677
    %v1777 = vunpack.c.l.b16 %v1678
    %v1778 = vunpack.c.h.b16 %v1678
    %v1779 = vunpack.c.l.b16 %v1679
    %v1780 = vunpack.c.h.b16 %v1679
    %v1781 = vunpack.c.l.b16 %v1680
    %v1782 = vunpack.c.h.b16 %v1680
    %v1783 = vunpack.c.l.b16 %v1681
    %v1784 = vunpack.c.h.b16 %v1681
    %v1785 = vpack.c.b16 %v1723, %v1721
    %v1786 = vpack.c.b16 %v1724, %v1722
    %v1787 = vpack.c.b16 %v1727, %v1725
    %v1788 = vpack.c.b16 %v1728, %v1726
    %v1789 = vpack.c.b16 %v1731, %v1729
    %v1790 = vpack.c.b16 %v1732, %v1730
    %v1791 = vpack.c.b16 %v1735, %v1733
    %v1792 = vpack.c.b16 %v1736, %v1734
    %v1793 = vpack.c.b16 %v1739, %v1737
    %v1794 = vpack.c.b16 %v1740, %v1738
    %v1795 = vpack.c.b16 %v1743, %v1741
    %v1796 = vpack.c.b16 %v1744, %v1742
    %v1797 = vpack.c.b16 %v1747, %v1745
    %v1798 = vpack.c.b16 %v1748, %v1746
    %v1799 = vpack.c.b16 %v1751, %v1749
    %v1800 = vpack.c.b16 %v1752, %v1750
    %v1801 = vpack.c.b16 %v1755, %v1753
    %v1802 = vpack.c.b16 %v1756, %v1754
    %v1803 = vpack.c.b16 %v1759, %v1757
    %v1804 = vpack.c.b16 %v1760, %v1758
    %v1805 = vpack.c.b16 %v1763, %v1761
    %v1806 = vpack.c.b16 %v1764, %v1762
    %v1807 = vpack.c.b16 %v1767, %v1765
    %v1808 = vpack.c.b16 %v1768, %v1766
    %v1809 = vpack.c.b16 %v1771, %v1769
    %v1810 = vpack.c.b16 %v1772, %v1770
    %v1811 = vpack.c.b16 %v1775, %v1773
    %v1812 = vpack.c.b16 %v1776, %v1774
    %v1813 = vpack.c.b16 %v1779, %v1777
    %v1814 = vpack.c.b16 %v1780, %v1778
    %v1815 = vpack.c.b16 %v1783, %v1781
    %v1816 = vpack.c.b16 %v1784, %v1782
    %1849 = vmatpush.bf16.msra.mxu0 %v1799
    %1850 = vmatpush.bf16.msra.mxu0 %v1797
    %1851 = vmatpush.bf16.msra.mxu0 %v1795
    %1852 = vmatpush.bf16.msra.mxu0 %v1793
    %1853 = vmatpush.bf16.msra.mxu0 %v1791
    %1854 = vmatpush.bf16.msra.mxu0 %v1789
    %1855 = vmatpush.bf16.msra.mxu0 %v1787
    %1856 = vmatpush.bf16.msra.mxu0 %v1785
    %1857 = vmatmul.bf16.gmra.mxu0 %v1685
    %v1858 = vpop.f32.mrf.mxu0
    %v1859 = vadd.f32 0.0, %v1858
    %v1860 = vpop.f32.mrf.mxu0
    %1861 = vdwg.mxu0
    %1862 = vmatpush.bf16.msra.mxu0 %v1815
    %1863 = vmatpush.bf16.msra.mxu0 %v1813
    %1864 = vmatpush.bf16.msra.mxu0 %v1811
    %1865 = vmatpush.bf16.msra.mxu0 %v1809
    %1866 = vmatpush.bf16.msra.mxu0 %v1807
    %1867 = vmatpush.bf16.msra.mxu0 %v1805
    %1868 = vmatpush.bf16.msra.mxu0 %v1803
    %1869 = vmatpush.bf16.msra.mxu0 %v1801
    %1870 = vmatmul.bf16.gmra.mxu0 %v1686
    %v1871 = vpop.f32.mrf.mxu0
    %v1872 = vadd.f32 %v1859, %v1871
    %v1873 = vpop.f32.mrf.mxu0
    %1874 = vdwg.mxu0
    %1875 = vmatpush.bf16.msra.mxu0 %v1800
    %1876 = vmatpush.bf16.msra.mxu0 %v1798
    %1877 = vmatpush.bf16.msra.mxu0 %v1796
    %1878 = vmatpush.bf16.msra.mxu0 %v1794
    %1879 = vmatpush.bf16.msra.mxu0 %v1792
    %1880 = vmatpush.bf16.msra.mxu0 %v1790
    %1881 = vmatpush.bf16.msra.mxu0 %v1788
    %1882 = vmatpush.bf16.msra.mxu0 %v1786
    %1883 = vmatmul.bf16.gmra.mxu0 %v1685
    %v1884 = vpop.f32.mrf.mxu0
    %v1885 = vadd.f32 0.0, %v1884
    %v1886 = vpop.f32.mrf.mxu0
    %1887 = vdwg.mxu0
    %1888 = vmatpush.bf16.msra.mxu0 %v1816
    %1889 = vmatpush.bf16.msra.mxu0 %v1814
    %1890 = vmatpush.bf16.msra.mxu0 %v1812
    %1891 = vmatpush.bf16.msra.mxu0 %v1810
    %1892 = vmatpush.bf16.msra.mxu0 %v1808
    %1893 = vmatpush.bf16.msra.mxu0 %v1806
    %1894 = vmatpush.bf16.msra.mxu0 %v1804
    %1895 = vmatpush.bf16.msra.mxu0 %v1802
    %1896 = vmatmul.bf16.gmra.mxu0 %v1686
    %v1897 = vpop.f32.mrf.mxu0
    %v1898 = vadd.f32 %v1885, %v1897
    %v1899 = vpop.f32.mrf.mxu0
    %1900 = vdwg.mxu0
    %v1901 = vpack.c.bf16 %v1898, %v1872
    %v1903 = vunpack.c.l.b16 %v1079
    %v1904 = vunpack.c.h.b16 %v1079
    %v1905 = vpack.c.b16 %v1903, %v1903
    %v1906 = vpack.c.b16 %v1904, %v1904
    %v1908 = vpack.i.b16 %v1905, %v1905
    %v1910 = vperm.slane %v1908, 0
    %v1912 = vpack.i.b16 %v1906, %v1906
    %v1914 = vperm.slane %v1912, 0
    %v1915 = vunpack.c.l.bf16 %v1901
    %v1916 = vunpack.c.h.bf16 %v1901
    %v1917 = vunpack.c.l.bf16 %v1910
    %v1918 = vunpack.c.l.bf16 %v1914
    %v1919 = vadd.f32 %v1915, %v1917
    %v1920 = vadd.f32 %v1916, %v1918
    %v1921 = vpack.c.bf16 %v1920, %v1919
    %v1922 = vunpack.c.l.bf16 %v1921
    %v1923 = vunpack.c.h.bf16 %v1921
    %v1924 = vmax.f32 %v1922, 0.0
    %v1925 = vmax.f32 %v1923, 0.0
    %v1926 = vpack.c.bf16 %v1925, %v1924
    %v1927 = vunpack.c.l.bf16 %v1926
    %v1928 = vunpack.c.h.bf16 %v1926
    %v1929 = vunpack.c.l.bf16 %v1648
    %v1930 = vunpack.c.h.bf16 %v1648
    %v1931 = vadd.f32 %v1927, %v1929
    %v1932 = vadd.f32 %v1928, %v1930
    %v1933 = vpack.c.bf16 %v1931, %v1931
    %v1934 = vpack.c.bf16 %v1932, %v1932
    %v1935 = vld [vmem:[%s5] sm:$0xf]
    %v1936 = vld [vmem:[%s5 + $0x4] sm:$0xf]
    %v1937 = vld [vmem:[%s5 + $0x8] sm:$0xf]
    %v1938 = vld [vmem:[%s5 + $0xc] sm:$0xf]
    %v1939 = vld [vmem:[%s5 + $0x10] sm:$0xf]
    %v1940 = vld [vmem:[%s5 + $0x14] sm:$0xf]
    %v1941 = vld [vmem:[%s5 + $0x18] sm:$0xf]
    %v1942 = vld [vmem:[%s5 + $0x1c] sm:$0xf]
    %v1943 = vld [vmem:[%s5 + $0x20] sm:$0xf]
    %v1944 = vld [vmem:[%s5 + $0x24] sm:$0xf]
    %v1945 = vld [vmem:[%s5 + $0x28] sm:$0xf]
    %v1946 = vld [vmem:[%s5 + $0x2c] sm:$0xf]
    %v1947 = vld [vmem:[%s5 + $0x30] sm:$0xf]
    %v1948 = vld [vmem:[%s5 + $0x34] sm:$0xf]
    %v1949 = vld [vmem:[%s5 + $0x38] sm:$0xf]
    %v1950 = vld [vmem:[%s5 + $0x3c] sm:$0xf]
    %v1951 = vld [vmem:[%s5 + $0x40] sm:$0xf]
    %v1952 = vld [vmem:[%s5 + $0x44] sm:$0xf]
    %v1953 = vld [vmem:[%s5 + $0x48] sm:$0xf]
    %v1954 = vld [vmem:[%s5 + $0x4c] sm:$0xf]
    %v1955 = vld [vmem:[%s5 + $0x50] sm:$0xf]
    %v1956 = vld [vmem:[%s5 + $0x54] sm:$0xf]
    %v1957 = vld [vmem:[%s5 + $0x58] sm:$0xf]
    %v1958 = vld [vmem:[%s5 + $0x5c] sm:$0xf]
    %v1959 = vld [vmem:[%s5 + $0x60] sm:$0xf]
    %v1960 = vld [vmem:[%s5 + $0x64] sm:$0xf]
    %v1961 = vld [vmem:[%s5 + $0x68] sm:$0xf]
    %v1962 = vld [vmem:[%s5 + $0x6c] sm:$0xf]
    %v1963 = vld [vmem:[%s5 + $0x70] sm:$0xf]
    %v1964 = vld [vmem:[%s5 + $0x74] sm:$0xf]
    %v1965 = vld [vmem:[%s5 + $0x78] sm:$0xf]
    %v1966 = vld [vmem:[%s5 + $0x7c] sm:$0xf]
    %v1967 = vld [vmem:[%s6] sm:$0x1]
    %v1969 = vperm.slane %v1967, 0
    %v2003 = vunpack.c.l.b16 %v1935
    %v2004 = vunpack.c.l.b16 %v1936
    %v2005 = vunpack.c.l.b16 %v1937
    %v2006 = vunpack.c.l.b16 %v1938
    %v2007 = vunpack.c.l.b16 %v1939
    %v2008 = vunpack.c.l.b16 %v1940
    %v2009 = vunpack.c.l.b16 %v1941
    %v2010 = vunpack.c.l.b16 %v1942
    %v2011 = vunpack.c.l.b16 %v1943
    %v2012 = vunpack.c.l.b16 %v1944
    %v2013 = vunpack.c.l.b16 %v1945
    %v2014 = vunpack.c.l.b16 %v1946
    %v2015 = vunpack.c.l.b16 %v1947
    %v2016 = vunpack.c.l.b16 %v1948
    %v2017 = vunpack.c.l.b16 %v1949
    %v2018 = vunpack.c.l.b16 %v1950
    %v2019 = vunpack.c.l.b16 %v1951
    %v2020 = vunpack.c.l.b16 %v1952
    %v2021 = vunpack.c.l.b16 %v1953
    %v2022 = vunpack.c.l.b16 %v1954
    %v2023 = vunpack.c.l.b16 %v1955
    %v2024 = vunpack.c.l.b16 %v1956
    %v2025 = vunpack.c.l.b16 %v1957
    %v2026 = vunpack.c.l.b16 %v1958
    %v2027 = vunpack.c.l.b16 %v1959
    %v2028 = vunpack.c.l.b16 %v1960
    %v2029 = vunpack.c.l.b16 %v1961
    %v2030 = vunpack.c.l.b16 %v1962
    %v2031 = vunpack.c.l.b16 %v1963
    %v2032 = vunpack.c.l.b16 %v1964
    %v2033 = vunpack.c.l.b16 %v1965
    %v2034 = vunpack.c.l.b16 %v1966
    %v2035 = vpack.c.b16 %v2004, %v2003
    %v2036 = vpack.c.b16 %v2006, %v2005
    %v2037 = vpack.c.b16 %v2008, %v2007
    %v2038 = vpack.c.b16 %v2010, %v2009
    %v2039 = vpack.c.b16 %v2012, %v2011
    %v2040 = vpack.c.b16 %v2014, %v2013
    %v2041 = vpack.c.b16 %v2016, %v2015
    %v2042 = vpack.c.b16 %v2018, %v2017
    %v2043 = vpack.c.b16 %v2020, %v2019
    %v2044 = vpack.c.b16 %v2022, %v2021
    %v2045 = vpack.c.b16 %v2024, %v2023
    %v2046 = vpack.c.b16 %v2026, %v2025
    %v2047 = vpack.c.b16 %v2028, %v2027
    %v2048 = vpack.c.b16 %v2030, %v2029
    %v2049 = vpack.c.b16 %v2032, %v2031
    %v2050 = vpack.c.b16 %v2034, %v2033
    %2067 = vmatpush.bf16.msra.mxu0 %v2042
    %2068 = vmatpush.bf16.msra.mxu0 %v2041
    %2069 = vmatpush.bf16.msra.mxu0 %v2040
    %2070 = vmatpush.bf16.msra.mxu0 %v2039
    %2071 = vmatpush.bf16.msra.mxu0 %v2038
    %2072 = vmatpush.bf16.msra.mxu0 %v2037
    %2073 = vmatpush.bf16.msra.mxu0 %v2036
    %2074 = vmatpush.bf16.msra.mxu0 %v2035
    %2075 = vmatmul.bf16.gmra.mxu0 %v1933
    %v2076 = vpop.f32.mrf.mxu0
    %v2077 = vadd.f32 %v1969, %v2076
    %v2078 = vpop.f32.mrf.mxu0
    %2079 = vdwg.mxu0
    %2080 = vmatpush.bf16.msra.mxu0 %v2050
    %2081 = vmatpush.bf16.msra.mxu0 %v2049
    %2082 = vmatpush.bf16.msra.mxu0 %v2048
    %2083 = vmatpush.bf16.msra.mxu0 %v2047
    %2084 = vmatpush.bf16.msra.mxu0 %v2046
    %2085 = vmatpush.bf16.msra.mxu0 %v2045
    %2086 = vmatpush.bf16.msra.mxu0 %v2044
    %2087 = vmatpush.bf16.msra.mxu0 %v2043
    %2088 = vmatmul.bf16.gmra.mxu0 %v1934
    %v2089 = vpop.f32.mrf.mxu0
    %v2090 = vadd.f32 %v2077, %v2089
    %v2091 = vpop.f32.mrf.mxu0
    %2092 = vdwg.mxu0
    %2093 = vst [vmem:[%s7] sm:$0xff] %v2090
    // Predicated region
    $region38: #{press_net_forward.1} parent=1 // pred_check
      _
    $region39: #{press_net_forward.1} parent=1 // pred_check_branch
      %2095 = sbr.rel (0) target = $region41
    $region40: #{press_net_forward.1} parent=1 // pred_region
      _
    $region41: #{press_net_forward.1} parent=1 // pred_fallthru
      _
    // Predicated region
    $region42: #{press_net_forward.1} parent=1 // pred_check
      _
    $region43: #{press_net_forward.1} parent=1 // pred_check_branch
      %2097 = sbr.rel (0) target = $region45
    $region44: #{press_net_forward.1} parent=1 // pred_region
      _
    $region45: #{press_net_forward.1} parent=1 // pred_fallthru
      _
    %2098 = vsyncpa [#allocation3], 1
    %2099 = vsyncpa [#allocation5], 1

</llo_original>
